<compile_context>
chip_gen: v7x
topology: tpu7x:2x2x1
jax: 0.10.0
libtpu: 0.0.40
codegen_flags: <defaults>
</compile_context>

<pallas_src>
import jax
import jax.numpy as jnp
import numpy as np
from jax.experimental import pallas as pl
from jax.experimental.pallas import tpu as pltpu

# ----------------------------- configuration -----------------------------
BATCH = 2
SEQ = 8
HIDDEN = 32
NUM_HEADS = 4
HEAD_DIM = HIDDEN // NUM_HEADS
HIDDEN_HALF = HIDDEN // 2
LN_EPS = 1e-5
SCALE = HEAD_DIM ** 0.5
INV_SCALE = 1.0 / SCALE
ROWS = BATCH * SEQ                      # 16

# single fused parameter slab: every region starts on a 128-lane boundary so
# in-kernel slices are tile-aligned views (no relayout before the MXU / VPU).
OFF_WQKV = 0        # (H, 3H)   fused q/k/v weight
OFF_WO   = 128      # (H, H)    output projection weight
OFF_W1   = 256      # (H, H/2)  importance linear-1 weight
OFF_BQKV = 384      # (ROWS, 3H)   fused q/k/v bias, pre-broadcast over rows
OFF_BO   = 512      # (ROWS, H)
OFF_B1   = 640      # (ROWS, H/2)
OFF_LNW  = 768      # (ROWS, H/2)  LayerNorm gamma
OFF_LNB  = 896      # (ROWS, H/2)  LayerNorm beta
OFF_W2   = 1024     # (ROWS, H/2)  w2 transposed into a row, pre-broadcast
OFF_B2   = 1152     # (ROWS, 1)
PARAM_LANES = 1280
OUT_LANES = 128     # merged output: lanes 0:H = output, lane H = importance


# ------------------------------ Pallas kernel ------------------------------
def _token_importance_kernel(x_ref, p_ref, out_ref):
    B, S, H, HH, HD, NH = BATCH, SEQ, HIDDEN, HIDDEN_HALF, HEAD_DIM, NUM_HEADS
    R = ROWS

    x = x_ref[...]                                          # (16, 32) f32

    # weights: 128-lane-aligned static slices of the fused parameter slab.
    w_qkv = p_ref[:, OFF_WQKV:OFF_WQKV + 3 * H]             # (32, 96)
    w_o   = p_ref[:, OFF_WO:OFF_WO + H]                     # (32, 32)
    w_1   = p_ref[:, OFF_W1:OFF_W1 + HH]                    # (32, 16)

    # small params, already replicated across the 16 rows (no XLU broadcasts).
    b_qkv = p_ref[0:R, OFF_BQKV:OFF_BQKV + 3 * H]           # (16, 96)
    b_o   = p_ref[0:R, OFF_BO:OFF_BO + H]                   # (16, 32)
    b_1   = p_ref[0:R, OFF_B1:OFF_B1 + HH]                  # (16, 16)
    ln_w  = p_ref[0:R, OFF_LNW:OFF_LNW + HH]                # (16, 16)
    ln_b  = p_ref[0:R, OFF_LNB:OFF_LNB + HH]                # (16, 16)
    w_2   = p_ref[0:R, OFF_W2:OFF_W2 + HH]                  # (16, 16)
    b_2   = p_ref[0:R, OFF_B2:OFF_B2 + 1]                   # (16, 1)

    # --- fused Q/K/V projection: one MXU matmul (16 x 32 x 96) ---
    qkv = jnp.dot(x, w_qkv, preferred_element_type=jnp.float32) + b_qkv   # (16, 96)
    qkv3 = qkv.reshape(B, S, 3 * H)

    # --- attention core on the MXU: batched 8x8x8 matmuls per head ---
    ctx_parts = []
    for h in range(NH):
        qh = qkv3[:, :, h * HD:(h + 1) * HD] * INV_SCALE              # (B, S, HD)
        kh = qkv3[:, :, H + h * HD:H + (h + 1) * HD]                  # (B, S, HD)
        vh = qkv3[:, :, 2 * H + h * HD:2 * H + (h + 1) * HD]          # (B, S, HD)

        s = jnp.einsum('bqd,bkd->bqk', qh, kh,
                       preferred_element_type=jnp.float32)            # (B, Sq, Sk)
        m = jnp.max(s, axis=-1, keepdims=True)
        p = jnp.exp(s - m)
        l = jnp.sum(p, axis=-1, keepdims=True)
        # EUP approx reciprocal + one Newton step -> ~f32 accuracy.
        r = pl.reciprocal(l, approx=True)
        r = r * (2.0 - l * r)
        attn = p * r                                                  # softmax
        # dropout: identity (eval mode)

        ctx_h = jnp.einsum('bqk,bkd->bqd', attn, vh,
                           preferred_element_type=jnp.float32)        # (B, Sq, HD)
        ctx_parts.append(ctx_h.reshape(R, HD))

    # context stays in registers; no VMEM scratch round-trip.
    ctx = jnp.concatenate(ctx_parts, axis=-1)                         # (16, 32)

    # --- output projection ---
    output = jnp.dot(ctx, w_o, preferred_element_type=jnp.float32) + b_o   # (16, 32)

    # --- importance head: Linear -> LayerNorm -> ReLU -> row-dot -> sigmoid ---
    h1 = jnp.dot(output, w_1, preferred_element_type=jnp.float32) + b_1    # (16, 16)
    mu = jnp.mean(h1, axis=-1, keepdims=True)
    var = jnp.mean((h1 - mu) ** 2, axis=-1, keepdims=True)
    hn = (h1 - mu) * jax.lax.rsqrt(var + LN_EPS) * ln_w + ln_b
    hr = jnp.maximum(hn, 0.0)                                              # (16, 16)

    logit = jnp.sum(hr * w_2, axis=-1, keepdims=True) + b_2                # (16, 1)
    imp = jax.nn.sigmoid(logit)

    # single merged output block: lanes 0:H = attention output, lane H = importance.
    # (Remaining lanes are never read host-side.)
    out_ref[:, 0:H] = output.astype(out_ref.dtype)
    out_ref[:, H:H + 1] = imp.astype(out_ref.dtype)


# --------------------------- host-side param packing ---------------------------
def pack_params(params):
    (wq, bq, wk, bk, wv, bv, wo, bo, w1, b1, lnw, lnb, w2, b2) = params
    H, HH, R = HIDDEN, HIDDEN_HALF, ROWS
    p = jnp.zeros((H, PARAM_LANES), jnp.float32)
    # weights at 128-lane-aligned offsets
    p = p.at[:, OFF_WQKV:OFF_WQKV + 3 * H].set(jnp.concatenate([wq, wk, wv], axis=1))
    p = p.at[:, OFF_WO:OFF_WO + H].set(wo)
    p = p.at[:, OFF_W1:OFF_W1 + HH].set(w1)
    # small params pre-broadcast across the 16 rows the kernel reads
    b_qkv = jnp.concatenate([bq, bk, bv], axis=1)                       # (1, 3H)
    p = p.at[0:R, OFF_BQKV:OFF_BQKV + 3 * H].set(jnp.broadcast_to(b_qkv, (R, 3 * H)))
    p = p.at[0:R, OFF_BO:OFF_BO + H].set(jnp.broadcast_to(bo, (R, H)))
    p = p.at[0:R, OFF_B1:OFF_B1 + HH].set(jnp.broadcast_to(b1, (R, HH)))
    p = p.at[0:R, OFF_LNW:OFF_LNW + HH].set(jnp.broadcast_to(lnw, (R, HH)))
    p = p.at[0:R, OFF_LNB:OFF_LNB + HH].set(jnp.broadcast_to(lnb, (R, HH)))
    p = p.at[0:R, OFF_W2:OFF_W2 + HH].set(jnp.broadcast_to(w2[:, 0][None, :], (R, HH)))
    p = p.at[0:R, OFF_B2:OFF_B2 + 1].set(jnp.broadcast_to(b2, (R, 1)))
    return p


# ------------------------------ JAX wrapper ------------------------------
def _cost_estimate():
    B, S, H, HH, HD, NH, R = BATCH, SEQ, HIDDEN, HIDDEN_HALF, HEAD_DIM, NUM_HEADS, ROWS
    flops = (2 * R * H * 3 * H            # fused QKV projection
             + 2 * 2 * B * NH * S * S * HD  # scores + context
             + 2 * R * H * H              # output projection
             + 2 * R * H * HH             # importance linear 1
             + 2 * R * HH)                # importance linear 2 (row dot)
    transc = B * NH * S * S + B * NH * S + 2 * R   # exp + recip + rsqrt + sigmoid
    bytes_accessed = (R * H + H * PARAM_LANES + R * OUT_LANES) * 4
    return pl.CostEstimate(flops=flops, transcendentals=transc,
                           bytes_accessed=bytes_accessed)


def token_importance_attention(x, params):
    B, S, H = x.shape
    wslab = pack_params(params)
    x2d = x.reshape(B * S, H)            # free reshape outside the kernel

    merged = pl.pallas_call(
        _token_importance_kernel,
        out_shape=jax.ShapeDtypeStruct((B * S, OUT_LANES), jnp.float32),
        # no grid: single invocation, everything resident in VMEM (one step,
        # one input DMA per array, single TensorCore — correct at this size).
        in_specs=[
            pl.BlockSpec((B * S, H), lambda: (0, 0)),
            pl.BlockSpec((H, PARAM_LANES), lambda: (0, 0)),
        ],
        out_specs=pl.BlockSpec((B * S, OUT_LANES), lambda: (0, 0)),
        cost_estimate=_cost_estimate(),
    )(x2d, wslab)

    out = merged[:, 0:H].reshape(B, S, H)
    imp = merged[:, H].reshape(B, S)
    return out, imp


# --------------------------- pure-JAX reference ---------------------------
def reference_forward(x, params):
    (wq, bq, wk, bk, wv, bv, wo, bo, w1, b1, lnw, lnb, w2, b2) = params
    B, S, H = x.shape
    q = (x @ wq + bq).reshape(B, S, NUM_HEADS, HEAD_DIM).transpose(0, 2, 1, 3)
    k = (x @ wk + bk).reshape(B, S, NUM_HEADS, HEAD_DIM).transpose(0, 2, 1, 3)
    v = (x @ wv + bv).reshape(B, S, NUM_HEADS, HEAD_DIM).transpose(0, 2, 1, 3)
    scores = q @ jnp.swapaxes(k, -2, -1) / SCALE
    attn = jax.nn.softmax(scores, axis=-1)
    ctx = (attn @ v).transpose(0, 2, 1, 3).reshape(B, S, H)
    out = ctx @ wo + bo
    h = out @ w1 + b1
    mu = h.mean(-1, keepdims=True)
    var = ((h - mu) ** 2).mean(-1, keepdims=True)
    h = (h - mu) / jnp.sqrt(var + LN_EPS) * lnw + lnb
    h = jnp.maximum(h, 0.0)
    imp = jax.nn.sigmoid((h @ w2 + b2)[..., 0])
    return out, imp


# ------------------------- deterministic param init -------------------------
def init_params(key):
    def lin(k, fan_in, fan_out):
        kw, kb = jax.random.split(k)
        bound = 1.0 / np.sqrt(fan_in)
        w = jax.random.uniform(kw, (fan_in, fan_out), jnp.float32, -bound, bound)
        b = jax.random.uniform(kb, (1, fan_out), jnp.float32, -bound, bound)
        return w, b

    keys = jax.random.split(key, 6)
    wq, bq = lin(keys[0], HIDDEN, HIDDEN)
    wk, bk = lin(keys[1], HIDDEN, HIDDEN)
    wv, bv = lin(keys[2], HIDDEN, HIDDEN)
    wo, bo = lin(keys[3], HIDDEN, HIDDEN)
    w1, b1 = lin(keys[4], HIDDEN, HIDDEN_HALF)
    lnw = jnp.ones((1, HIDDEN_HALF), jnp.float32)     # LayerNorm default init
    lnb = jnp.zeros((1, HIDDEN_HALF), jnp.float32)
    w2, b2 = lin(keys[5], HIDDEN_HALF, 1)
    return (wq, bq, wk, bk, wv, bv, wo, bo, w1, b1, lnw, lnb, w2, b2)


# ---------------------------------- main ----------------------------------
if __name__ == "__main__":
    key = jax.random.PRNGKey(0)
    kx, kp = jax.random.split(key)
    x = jax.random.normal(kx, (BATCH, SEQ, HIDDEN), jnp.float32)
    params = init_params(kp)

    out, imp = token_importance_attention(x, params)
    out, imp = jax.block_until_ready((out, imp))

    ref_out, ref_imp = reference_forward(x, params)
    # slightly looser than 1e-4: the kernel re-associates sums (fused QKV,
    # q-side scaling, MXU einsum accumulation order) relative to the reference.
    np.testing.assert_allclose(np.asarray(out), np.asarray(ref_out), atol=2e-4, rtol=2e-4)
    np.testing.assert_allclose(np.asarray(imp), np.asarray(ref_imp), atol=2e-4, rtol=2e-4)

    print("KERNEL_OK")
</pallas_src>

<mosaic_0001>
module attributes {stable_mosaic.version = 11 : i64} {
  func.func @_token_importance_kernel(%arg0: memref<16x32xf32, #tpu.memory_space<vmem>>, %arg1: memref<32x1280xf32, #tpu.memory_space<vmem>>, %arg2: memref<16x128xf32, #tpu.memory_space<vmem>>) attributes {dimension_semantics = [], scalar_prefetch = 0 : i64, scratch_operands = 0 : i64, tpu.core_type = #tpu.core_type<tc>} {
    %c0 = arith.constant 0 : index
    %c0_0 = arith.constant 0 : index
    %0 = vector.load %arg0[%c0, %c0_0] : memref<16x32xf32, #tpu.memory_space<vmem>>, vector<16x32xf32>
    %c0_1 = arith.constant 0 : index
    %c0_2 = arith.constant 0 : index
    %1 = vector.load %arg1[%c0_1, %c0_2] : memref<32x1280xf32, #tpu.memory_space<vmem>>, vector<32x96xf32>
    %c0_3 = arith.constant 0 : index
    %c128 = arith.constant 128 : index
    %2 = vector.load %arg1[%c0_3, %c128] : memref<32x1280xf32, #tpu.memory_space<vmem>>, vector<32x32xf32>
    %c0_4 = arith.constant 0 : index
    %c256 = arith.constant 256 : index
    %3 = vector.load %arg1[%c0_4, %c256] : memref<32x1280xf32, #tpu.memory_space<vmem>>, vector<32x16xf32>
    %c0_5 = arith.constant 0 : index
    %c384 = arith.constant 384 : index
    %4 = vector.load %arg1[%c0_5, %c384] : memref<32x1280xf32, #tpu.memory_space<vmem>>, vector<16x96xf32>
    %c0_6 = arith.constant 0 : index
    %c512 = arith.constant 512 : index
    %5 = vector.load %arg1[%c0_6, %c512] : memref<32x1280xf32, #tpu.memory_space<vmem>>, vector<16x32xf32>
    %c0_7 = arith.constant 0 : index
    %c640 = arith.constant 640 : index
    %6 = vector.load %arg1[%c0_7, %c640] : memref<32x1280xf32, #tpu.memory_space<vmem>>, vector<16x16xf32>
    %c0_8 = arith.constant 0 : index
    %c768 = arith.constant 768 : index
    %7 = vector.load %arg1[%c0_8, %c768] : memref<32x1280xf32, #tpu.memory_space<vmem>>, vector<16x16xf32>
    %c0_9 = arith.constant 0 : index
    %c896 = arith.constant 896 : index
    %8 = vector.load %arg1[%c0_9, %c896] : memref<32x1280xf32, #tpu.memory_space<vmem>>, vector<16x16xf32>
    %c0_10 = arith.constant 0 : index
    %c1024 = arith.constant 1024 : index
    %9 = vector.load %arg1[%c0_10, %c1024] : memref<32x1280xf32, #tpu.memory_space<vmem>>, vector<16x16xf32>
    %c0_11 = arith.constant 0 : index
    %c1152 = arith.constant 1152 : index
    %10 = vector.load %arg1[%c0_11, %c1152] : memref<32x1280xf32, #tpu.memory_space<vmem>>, vector<16x1xf32>
    %cst = arith.constant dense<0.000000e+00> : vector<16x96xf32>
    %11 = tpu.matmul %0, %1, %cst {dimension_numbers = #tpu.dot_dimension_numbers<[1], [0], [0], [1], [0, 0, 1, 1], [], []>} : vector<16x32xf32>, vector<32x96xf32>, vector<16x96xf32> -> vector<16x96xf32>
    %12 = arith.addf %11, %4 : vector<16x96xf32>
    %13 = vector.shape_cast %12 : vector<16x96xf32> to vector<2x8x96xf32>
    %14 = vector.extract_strided_slice %13 {offsets = [0, 0, 0], sizes = [2, 8, 8], strides = [1, 1, 1]} : vector<2x8x96xf32> to vector<2x8x8xf32>
    %cst_12 = arith.constant 0.353553385 : f32
    %15 = vector.broadcast %cst_12 : f32 to vector<2x8x8xf32>
    %16 = arith.mulf %14, %15 : vector<2x8x8xf32>
    %17 = vector.extract_strided_slice %13 {offsets = [0, 0, 32], sizes = [2, 8, 8], strides = [1, 1, 1]} : vector<2x8x96xf32> to vector<2x8x8xf32>
    %18 = vector.extract_strided_slice %13 {offsets = [0, 0, 64], sizes = [2, 8, 8], strides = [1, 1, 1]} : vector<2x8x96xf32> to vector<2x8x8xf32>
    "tpu.trace_start"() <{level = 10 : i32, message = "bqd,bkd->bqk"}> : () -> ()
    %cst_13 = arith.constant dense<0.000000e+00> : vector<2x8x8xf32>
    %19 = tpu.matmul %16, %17, %cst_13 {dimension_numbers = #tpu.dot_dimension_numbers<[2], [2], [1], [1], [0, 0, 0, 1, 1, 1], [0], [0]>} : vector<2x8x8xf32>, vector<2x8x8xf32>, vector<2x8x8xf32> -> vector<2x8x8xf32>
    "tpu.trace_stop"() : () -> ()
    %cst_14 = arith.constant dense<0xFF800000> : vector<2x8xf32>
    %20 = vector.multi_reduction <maximumf>, %19, %cst_14 [2] : vector<2x8x8xf32> to vector<2x8xf32>
    %21 = vector.shape_cast %20 : vector<2x8xf32> to vector<2x8x1xf32>
    %22 = vector.broadcast %21 : vector<2x8x1xf32> to vector<2x8x8xf32>
    %23 = arith.subf %19, %22 : vector<2x8x8xf32>
    %24 = math.exp %23 : vector<2x8x8xf32>
    %cst_15 = arith.constant dense<0.000000e+00> : vector<2x8xf32>
    %25 = vector.multi_reduction <add>, %24, %cst_15 [2] : vector<2x8x8xf32> to vector<2x8xf32>
    %26 = vector.shape_cast %25 : vector<2x8xf32> to vector<2x8x1xf32>
    %27 = tpu.reciprocal %26 {approx = true} : vector<2x8x1xf32> -> vector<2x8x1xf32>
    %28 = arith.mulf %26, %27 : vector<2x8x1xf32>
    %cst_16 = arith.constant 2.000000e+00 : f32
    %29 = vector.broadcast %cst_16 : f32 to vector<2x8x1xf32>
    %30 = arith.subf %29, %28 : vector<2x8x1xf32>
    %31 = arith.mulf %27, %30 : vector<2x8x1xf32>
    %32 = vector.broadcast %31 : vector<2x8x1xf32> to vector<2x8x8xf32>
    %33 = arith.mulf %24, %32 : vector<2x8x8xf32>
    "tpu.trace_start"() <{level = 10 : i32, message = "bqk,bkd->bqd"}> : () -> ()
    %cst_17 = arith.constant dense<0.000000e+00> : vector<2x8x8xf32>
    %34 = tpu.matmul %33, %18, %cst_17 {dimension_numbers = #tpu.dot_dimension_numbers<[2], [1], [1], [2], [0, 0, 0, 1, 1, 2], [0], [0]>} : vector<2x8x8xf32>, vector<2x8x8xf32>, vector<2x8x8xf32> -> vector<2x8x8xf32>
    "tpu.trace_stop"() : () -> ()
    %35 = vector.shape_cast %34 : vector<2x8x8xf32> to vector<16x8xf32>
    %36 = vector.extract_strided_slice %13 {offsets = [0, 0, 8], sizes = [2, 8, 8], strides = [1, 1, 1]} : vector<2x8x96xf32> to vector<2x8x8xf32>
    %cst_18 = arith.constant 0.353553385 : f32
    %37 = vector.broadcast %cst_18 : f32 to vector<2x8x8xf32>
    %38 = arith.mulf %36, %37 : vector<2x8x8xf32>
    %39 = vector.extract_strided_slice %13 {offsets = [0, 0, 40], sizes = [2, 8, 8], strides = [1, 1, 1]} : vector<2x8x96xf32> to vector<2x8x8xf32>
    %40 = vector.extract_strided_slice %13 {offsets = [0, 0, 72], sizes = [2, 8, 8], strides = [1, 1, 1]} : vector<2x8x96xf32> to vector<2x8x8xf32>
    "tpu.trace_start"() <{level = 10 : i32, message = "bqd,bkd->bqk"}> : () -> ()
    %cst_19 = arith.constant dense<0.000000e+00> : vector<2x8x8xf32>
    %41 = tpu.matmul %38, %39, %cst_19 {dimension_numbers = #tpu.dot_dimension_numbers<[2], [2], [1], [1], [0, 0, 0, 1, 1, 1], [0], [0]>} : vector<2x8x8xf32>, vector<2x8x8xf32>, vector<2x8x8xf32> -> vector<2x8x8xf32>
    "tpu.trace_stop"() : () -> ()
    %cst_20 = arith.constant dense<0xFF800000> : vector<2x8xf32>
    %42 = vector.multi_reduction <maximumf>, %41, %cst_20 [2] : vector<2x8x8xf32> to vector<2x8xf32>
    %43 = vector.shape_cast %42 : vector<2x8xf32> to vector<2x8x1xf32>
    %44 = vector.broadcast %43 : vector<2x8x1xf32> to vector<2x8x8xf32>
    %45 = arith.subf %41, %44 : vector<2x8x8xf32>
    %46 = math.exp %45 : vector<2x8x8xf32>
    %cst_21 = arith.constant dense<0.000000e+00> : vector<2x8xf32>
    %47 = vector.multi_reduction <add>, %46, %cst_21 [2] : vector<2x8x8xf32> to vector<2x8xf32>
    %48 = vector.shape_cast %47 : vector<2x8xf32> to vector<2x8x1xf32>
    %49 = tpu.reciprocal %48 {approx = true} : vector<2x8x1xf32> -> vector<2x8x1xf32>
    %50 = arith.mulf %48, %49 : vector<2x8x1xf32>
    %cst_22 = arith.constant 2.000000e+00 : f32
    %51 = vector.broadcast %cst_22 : f32 to vector<2x8x1xf32>
    %52 = arith.subf %51, %50 : vector<2x8x1xf32>
    %53 = arith.mulf %49, %52 : vector<2x8x1xf32>
    %54 = vector.broadcast %53 : vector<2x8x1xf32> to vector<2x8x8xf32>
    %55 = arith.mulf %46, %54 : vector<2x8x8xf32>
    "tpu.trace_start"() <{level = 10 : i32, message = "bqk,bkd->bqd"}> : () -> ()
    %cst_23 = arith.constant dense<0.000000e+00> : vector<2x8x8xf32>
    %56 = tpu.matmul %55, %40, %cst_23 {dimension_numbers = #tpu.dot_dimension_numbers<[2], [1], [1], [2], [0, 0, 0, 1, 1, 2], [0], [0]>} : vector<2x8x8xf32>, vector<2x8x8xf32>, vector<2x8x8xf32> -> vector<2x8x8xf32>
    "tpu.trace_stop"() : () -> ()
    %57 = vector.shape_cast %56 : vector<2x8x8xf32> to vector<16x8xf32>
    %58 = vector.extract_strided_slice %13 {offsets = [0, 0, 16], sizes = [2, 8, 8], strides = [1, 1, 1]} : vector<2x8x96xf32> to vector<2x8x8xf32>
    %cst_24 = arith.constant 0.353553385 : f32
    %59 = vector.broadcast %cst_24 : f32 to vector<2x8x8xf32>
    %60 = arith.mulf %58, %59 : vector<2x8x8xf32>
    %61 = vector.extract_strided_slice %13 {offsets = [0, 0, 48], sizes = [2, 8, 8], strides = [1, 1, 1]} : vector<2x8x96xf32> to vector<2x8x8xf32>
    %62 = vector.extract_strided_slice %13 {offsets = [0, 0, 80], sizes = [2, 8, 8], strides = [1, 1, 1]} : vector<2x8x96xf32> to vector<2x8x8xf32>
    "tpu.trace_start"() <{level = 10 : i32, message = "bqd,bkd->bqk"}> : () -> ()
    %cst_25 = arith.constant dense<0.000000e+00> : vector<2x8x8xf32>
    %63 = tpu.matmul %60, %61, %cst_25 {dimension_numbers = #tpu.dot_dimension_numbers<[2], [2], [1], [1], [0, 0, 0, 1, 1, 1], [0], [0]>} : vector<2x8x8xf32>, vector<2x8x8xf32>, vector<2x8x8xf32> -> vector<2x8x8xf32>
    "tpu.trace_stop"() : () -> ()
    %cst_26 = arith.constant dense<0xFF800000> : vector<2x8xf32>
    %64 = vector.multi_reduction <maximumf>, %63, %cst_26 [2] : vector<2x8x8xf32> to vector<2x8xf32>
    %65 = vector.shape_cast %64 : vector<2x8xf32> to vector<2x8x1xf32>
    %66 = vector.broadcast %65 : vector<2x8x1xf32> to vector<2x8x8xf32>
    %67 = arith.subf %63, %66 : vector<2x8x8xf32>
    %68 = math.exp %67 : vector<2x8x8xf32>
    %cst_27 = arith.constant dense<0.000000e+00> : vector<2x8xf32>
    %69 = vector.multi_reduction <add>, %68, %cst_27 [2] : vector<2x8x8xf32> to vector<2x8xf32>
    %70 = vector.shape_cast %69 : vector<2x8xf32> to vector<2x8x1xf32>
    %71 = tpu.reciprocal %70 {approx = true} : vector<2x8x1xf32> -> vector<2x8x1xf32>
    %72 = arith.mulf %70, %71 : vector<2x8x1xf32>
    %cst_28 = arith.constant 2.000000e+00 : f32
    %73 = vector.broadcast %cst_28 : f32 to vector<2x8x1xf32>
    %74 = arith.subf %73, %72 : vector<2x8x1xf32>
    %75 = arith.mulf %71, %74 : vector<2x8x1xf32>
    %76 = vector.broadcast %75 : vector<2x8x1xf32> to vector<2x8x8xf32>
    %77 = arith.mulf %68, %76 : vector<2x8x8xf32>
    "tpu.trace_start"() <{level = 10 : i32, message = "bqk,bkd->bqd"}> : () -> ()
    %cst_29 = arith.constant dense<0.000000e+00> : vector<2x8x8xf32>
    %78 = tpu.matmul %77, %62, %cst_29 {dimension_numbers = #tpu.dot_dimension_numbers<[2], [1], [1], [2], [0, 0, 0, 1, 1, 2], [0], [0]>} : vector<2x8x8xf32>, vector<2x8x8xf32>, vector<2x8x8xf32> -> vector<2x8x8xf32>
    "tpu.trace_stop"() : () -> ()
    %79 = vector.shape_cast %78 : vector<2x8x8xf32> to vector<16x8xf32>
    %80 = vector.extract_strided_slice %13 {offsets = [0, 0, 24], sizes = [2, 8, 8], strides = [1, 1, 1]} : vector<2x8x96xf32> to vector<2x8x8xf32>
    %cst_30 = arith.constant 0.353553385 : f32
    %81 = vector.broadcast %cst_30 : f32 to vector<2x8x8xf32>
    %82 = arith.mulf %80, %81 : vector<2x8x8xf32>
    %83 = vector.extract_strided_slice %13 {offsets = [0, 0, 56], sizes = [2, 8, 8], strides = [1, 1, 1]} : vector<2x8x96xf32> to vector<2x8x8xf32>
    %84 = vector.extract_strided_slice %13 {offsets = [0, 0, 88], sizes = [2, 8, 8], strides = [1, 1, 1]} : vector<2x8x96xf32> to vector<2x8x8xf32>
    "tpu.trace_start"() <{level = 10 : i32, message = "bqd,bkd->bqk"}> : () -> ()
    %cst_31 = arith.constant dense<0.000000e+00> : vector<2x8x8xf32>
    %85 = tpu.matmul %82, %83, %cst_31 {dimension_numbers = #tpu.dot_dimension_numbers<[2], [2], [1], [1], [0, 0, 0, 1, 1, 1], [0], [0]>} : vector<2x8x8xf32>, vector<2x8x8xf32>, vector<2x8x8xf32> -> vector<2x8x8xf32>
    "tpu.trace_stop"() : () -> ()
    %cst_32 = arith.constant dense<0xFF800000> : vector<2x8xf32>
    %86 = vector.multi_reduction <maximumf>, %85, %cst_32 [2] : vector<2x8x8xf32> to vector<2x8xf32>
    %87 = vector.shape_cast %86 : vector<2x8xf32> to vector<2x8x1xf32>
    %88 = vector.broadcast %87 : vector<2x8x1xf32> to vector<2x8x8xf32>
    %89 = arith.subf %85, %88 : vector<2x8x8xf32>
    %90 = math.exp %89 : vector<2x8x8xf32>
    %cst_33 = arith.constant dense<0.000000e+00> : vector<2x8xf32>
    %91 = vector.multi_reduction <add>, %90, %cst_33 [2] : vector<2x8x8xf32> to vector<2x8xf32>
    %92 = vector.shape_cast %91 : vector<2x8xf32> to vector<2x8x1xf32>
    %93 = tpu.reciprocal %92 {approx = true} : vector<2x8x1xf32> -> vector<2x8x1xf32>
    %94 = arith.mulf %92, %93 : vector<2x8x1xf32>
    %cst_34 = arith.constant 2.000000e+00 : f32
    %95 = vector.broadcast %cst_34 : f32 to vector<2x8x1xf32>
    %96 = arith.subf %95, %94 : vector<2x8x1xf32>
    %97 = arith.mulf %93, %96 : vector<2x8x1xf32>
    %98 = vector.broadcast %97 : vector<2x8x1xf32> to vector<2x8x8xf32>
    %99 = arith.mulf %90, %98 : vector<2x8x8xf32>
    "tpu.trace_start"() <{level = 10 : i32, message = "bqk,bkd->bqd"}> : () -> ()
    %cst_35 = arith.constant dense<0.000000e+00> : vector<2x8x8xf32>
    %100 = tpu.matmul %99, %84, %cst_35 {dimension_numbers = #tpu.dot_dimension_numbers<[2], [1], [1], [2], [0, 0, 0, 1, 1, 2], [0], [0]>} : vector<2x8x8xf32>, vector<2x8x8xf32>, vector<2x8x8xf32> -> vector<2x8x8xf32>
    "tpu.trace_stop"() : () -> ()
    %101 = vector.shape_cast %100 : vector<2x8x8xf32> to vector<16x8xf32>
    %102 = tpu.concatenate %35, %57, %79, %101 in 1 : vector<16x8xf32>, vector<16x8xf32>, vector<16x8xf32>, vector<16x8xf32> -> vector<16x32xf32>
    %cst_36 = arith.constant dense<0.000000e+00> : vector<16x32xf32>
    %103 = tpu.matmul %102, %2, %cst_36 {dimension_numbers = #tpu.dot_dimension_numbers<[1], [0], [0], [1], [0, 0, 1, 1], [], []>} : vector<16x32xf32>, vector<32x32xf32>, vector<16x32xf32> -> vector<16x32xf32>
    %104 = arith.addf %103, %5 : vector<16x32xf32>
    %cst_37 = arith.constant dense<0.000000e+00> : vector<16x16xf32>
    %105 = tpu.matmul %104, %3, %cst_37 {dimension_numbers = #tpu.dot_dimension_numbers<[1], [0], [0], [1], [0, 0, 1, 1], [], []>} : vector<16x32xf32>, vector<32x16xf32>, vector<16x16xf32> -> vector<16x16xf32>
    %106 = arith.addf %105, %6 : vector<16x16xf32>
    %cst_38 = arith.constant dense<0.000000e+00> : vector<16xf32>
    %107 = vector.multi_reduction <add>, %106, %cst_38 [1] : vector<16x16xf32> to vector<16xf32>
    %108 = vector.shape_cast %107 : vector<16xf32> to vector<16x1xf32>
    %cst_39 = arith.constant 1.600000e+01 : f32
    %109 = vector.broadcast %cst_39 : f32 to vector<16x1xf32>
    %110 = arith.divf %108, %109 : vector<16x1xf32>
    %111 = vector.broadcast %110 : vector<16x1xf32> to vector<16x16xf32>
    %112 = arith.subf %106, %111 : vector<16x16xf32>
    %113 = arith.mulf %112, %112 : vector<16x16xf32>
    %cst_40 = arith.constant dense<0.000000e+00> : vector<16xf32>
    %114 = vector.multi_reduction <add>, %113, %cst_40 [1] : vector<16x16xf32> to vector<16xf32>
    %115 = vector.shape_cast %114 : vector<16xf32> to vector<16x1xf32>
    %cst_41 = arith.constant 1.600000e+01 : f32
    %116 = vector.broadcast %cst_41 : f32 to vector<16x1xf32>
    %117 = arith.divf %115, %116 : vector<16x1xf32>
    %118 = vector.broadcast %110 : vector<16x1xf32> to vector<16x16xf32>
    %119 = arith.subf %106, %118 : vector<16x16xf32>
    %cst_42 = arith.constant 9.99999974E-6 : f32
    %120 = vector.broadcast %cst_42 : f32 to vector<16x1xf32>
    %121 = arith.addf %117, %120 : vector<16x1xf32>
    %122 = math.rsqrt %121 : vector<16x1xf32>
    %123 = vector.broadcast %122 : vector<16x1xf32> to vector<16x16xf32>
    %124 = arith.mulf %119, %123 : vector<16x16xf32>
    %125 = arith.mulf %124, %7 : vector<16x16xf32>
    %126 = arith.addf %125, %8 : vector<16x16xf32>
    %cst_43 = arith.constant 0.000000e+00 : f32
    %127 = vector.broadcast %cst_43 : f32 to vector<16x16xf32>
    %128 = arith.maximumf %126, %127 : vector<16x16xf32>
    %129 = arith.mulf %128, %9 : vector<16x16xf32>
    %cst_44 = arith.constant dense<0.000000e+00> : vector<16xf32>
    %130 = vector.multi_reduction <add>, %129, %cst_44 [1] : vector<16x16xf32> to vector<16xf32>
    %131 = vector.shape_cast %130 : vector<16xf32> to vector<16x1xf32>
    %132 = arith.addf %131, %10 : vector<16x1xf32>
    %133 = arith.negf %132 : vector<16x1xf32>
    %134 = math.exp %133 : vector<16x1xf32>
    %cst_45 = arith.constant 1.000000e+00 : f32
    %135 = vector.broadcast %cst_45 : f32 to vector<16x1xf32>
    %136 = arith.addf %135, %134 : vector<16x1xf32>
    %137 = arith.divf %135, %136 : vector<16x1xf32>
    %c0_46 = arith.constant 0 : index
    %c0_47 = arith.constant 0 : index
    %138 = vector.load %arg2[%c0_46, %c0_47] : memref<16x128xf32, #tpu.memory_space<vmem>>, vector<16x32xf32>
    tpu.vector_store %arg2[%c0_46, %c0_47], %104 {strides = array<i32>} : memref<16x128xf32, #tpu.memory_space<vmem>>, vector<16x32xf32>,
    %c0_48 = arith.constant 0 : index
    %c32 = arith.constant 32 : index
    %139 = vector.load %arg2[%c0_48, %c32] : memref<16x128xf32, #tpu.memory_space<vmem>>, vector<16x1xf32>
    tpu.vector_store %arg2[%c0_48, %c32], %137 {strides = array<i32>} : memref<16x128xf32, #tpu.memory_space<vmem>>, vector<16x1xf32>,
    return
  }
}

</mosaic_0001>

<llo_original>
// kernel: tpu_custom_call.1
$region0: #{tpu_custom_call.1}
  #allocation0 [shape = 'u32[]', space=smem, size = 0x4, offset = 0x4, fixed_abs, tag = 'smem constant byte address 0x4 - core index']
  #allocation1 [shape = 'u32[144,128]{1,0:T(1,128)}', space=vmem, size = 0x12000, scoped, tag = 'internal scratch']
  %s0 = inlined_call_operand.hbm [shape: f32[16,32], index: 0, kind: input, shape index: {}]
  %s1 = inlined_call_operand.hbm [shape: f32[32,1280], index: 1, kind: input, shape index: {}]
  %s2 = inlined_call_operand.hbm [shape: f32[16,128], index: 2, kind: output, shape index: {}]
  %s3 = sld [smem:[#allocation0]]
  $region26: #{tpu_custom_call.1} parent=0
    _
  %s5 = ssub.s32 1, %s3
  %s6 = scalar_select 0, %s5, %s3
  $region1: #{tpu_custom_call.1} parent=0
    #allocation2 [shape = 'u8[8192]{0}', space=vmem, size = 0x2000, scoped, tag = 'input window, operand 0, single buffered']
    #allocation3 [shape = 's32[1]{0}', space=sflag, size = 0x4, scoped, tag = 'scoped memory for tpu_custom_call.1']
    #allocation4 [shape = 's32[1]{0}', space=sflag, size = 0x4, scoped, tag = 'scoped memory for tpu_custom_call.1']
    #allocation5 [shape = 'u8[163840]{0}', space=vmem, size = 0x28000, scoped, tag = 'input window, operand 1, single buffered']
    #allocation6 [shape = 's32[1]{0}', space=sflag, size = 0x4, scoped, tag = 'scoped memory for tpu_custom_call.1']
    #allocation7 [shape = 'u8[8192]{0}', space=vmem, size = 0x2000, scoped, tag = 'output window, operand 0, single buffered']
    %7 = vsyncpa [#allocation3], 0
    %8 = vsyncpa [#allocation6], 0
    %9 = vsyncpa [#allocation4], 0
    // Predicated region
    $region2: #{tpu_custom_call.1} parent=1 // pred_check
      _
    $region3: #{tpu_custom_call.1} parent=1 // pred_check_branch
      %11 = sbr.rel (0) target = $region5
    $region4: #{tpu_custom_call.1} parent=1 // pred_region
      %s13 = ssub.s32 256, 256
      %14 = vsyncadd [#allocation3], %s13
      %s15 = sshll.u32 [#allocation2], 4
      %s16 = int_to_ptr.vmem [resolvable:$true] %s15
      %21 = dma.hbm_to_vmem [thread:$0]  %s0, 256, %s16, [#allocation3], 128, 128, 8
    $region5: #{tpu_custom_call.1} parent=1 // pred_fallthru
      _
    // Predicated region
    $region6: #{tpu_custom_call.1} parent=1 // pred_check
      _
    $region7: #{tpu_custom_call.1} parent=1 // pred_check_branch
      %23 = sbr.rel (0) target = $region9
    $region8: #{tpu_custom_call.1} parent=1 // pred_region
      %s25 = ssub.s32 5120, 5120
      %26 = vsyncadd [#allocation6], %s25
      %s27 = sshll.u32 [#allocation5], 4
      %s28 = int_to_ptr.vmem [resolvable:$true] %s27
      %33 = dma.hbm_to_vmem [thread:$0]  %s1, 5120, %s28, [#allocation6], 1280, 1280, 80
    $region9: #{tpu_custom_call.1} parent=1 // pred_fallthru
      _
    // Predicated region
    $region10: #{tpu_custom_call.1} parent=1 // pred_check
      _
    $region11: #{tpu_custom_call.1} parent=1 // pred_check_branch
      %35 = sbr.rel (0) target = $region13
    $region12: #{tpu_custom_call.1} parent=1 // pred_region
      %36 = dma.done [#allocation3], 256
    $region13: #{tpu_custom_call.1} parent=1 // pred_fallthru
      _
    // Predicated region
    $region14: #{tpu_custom_call.1} parent=1 // pred_check
      _
    $region15: #{tpu_custom_call.1} parent=1 // pred_check_branch
      %38 = sbr.rel (0) target = $region17
    $region16: #{tpu_custom_call.1} parent=1 // pred_region
      %39 = dma.done [#allocation6], 5120
    $region17: #{tpu_custom_call.1} parent=1 // pred_fallthru
      _
    %v40 = vld [vmem:[#allocation2] sm:$0xff]
    %v41 = vld [vmem:[#allocation2 + $0x8] sm:$0xff]
    %v42 = vld [vmem:[#allocation5] sm:$0xff]
    %v43 = vld [vmem:[#allocation5 + $0x50] sm:$0xff]
    %v44 = vld [vmem:[#allocation5 + $0xa0] sm:$0xff]
    %v45 = vld [vmem:[#allocation5 + $0xf0] sm:$0xff]
    %v46 = vld [vmem:[#allocation5 + $0x8] sm:$0xff]
    %v47 = vld [vmem:[#allocation5 + $0x58] sm:$0xff]
    %v48 = vld [vmem:[#allocation5 + $0xa8] sm:$0xff]
    %v49 = vld [vmem:[#allocation5 + $0xf8] sm:$0xff]
    %v50 = vld [vmem:[#allocation5 + $0x10] sm:$0xff]
    %v51 = vld [vmem:[#allocation5 + $0x60] sm:$0xff]
    %v52 = vld [vmem:[#allocation5 + $0xb0] sm:$0xff]
    %v53 = vld [vmem:[#allocation5 + $0x100] sm:$0xff]
    %v54 = vld [vmem:[#allocation5 + $0x18] sm:$0xff]
    %v55 = vld [vmem:[#allocation5 + $0x68] sm:$0xff]
    %v56 = vld [vmem:[#allocation5 + $0x20] sm:$0xff]
    %v57 = vld [vmem:[#allocation5 + $0x70] sm:$0xff]
    %v58 = vld [vmem:[#allocation5 + $0x28] sm:$0xff]
    %v59 = vld [vmem:[#allocation5 + $0x78] sm:$0xff]
    %v60 = vld [vmem:[#allocation5 + $0x30] sm:$0xff]
    %v61 = vld [vmem:[#allocation5 + $0x80] sm:$0xff]
    %v62 = vld [vmem:[#allocation5 + $0x38] sm:$0xff]
    %v63 = vld [vmem:[#allocation5 + $0x88] sm:$0xff]
    %v64 = vld [vmem:[#allocation5 + $0x40] sm:$0xff]
    %v65 = vld [vmem:[#allocation5 + $0x90] sm:$0xff]
    %v66 = vld [vmem:[#allocation5 + $0x48] sm:$0xff]
    %v67 = vld [vmem:[#allocation5 + $0x98] sm:$0xff]
    %vm68 = vcmask 261120
    %v70 = vsel %vm68, %v40, 0
    %v73 = vsel %vm68, %v41, 0
    %75 = vmatprep.subr.mxu0 0.0
    %76 = vmatpush1.msra.mxu0 %v42
    %77 = vmatprep.subr.mxu0 0.0
    %78 = vmatpush1.msra.mxu0 %v43
    %79 = vmatprep.subr.mxu0 0.0
    %80 = vmatpush1.msra.mxu0 %v44
    %81 = vmatprep.subr.mxu0 0.0
    %82 = vmatpush1.msra.mxu0 %v45
    %83 = vmatprep.subr.mxu0 0.0
    %84 = vmatpush1.msra.mxu0 0.0
    %85 = vmatprep.subr.mxu0 0.0
    %86 = vmatpush1.msra.mxu0 0.0
    %87 = vmatprep.subr.mxu0 0.0
    %88 = vmatpush1.msra.mxu0 0.0
    %89 = vmatprep.subr.mxu0 0.0
    %90 = vmatpush1.msra.mxu0 0.0
    %91 = vmatprep.subr.mxu0 0.0
    %92 = vmatpush1.msra.mxu0 0.0
    %93 = vmatprep.subr.mxu0 0.0
    %94 = vmatpush1.msra.mxu0 0.0
    %95 = vmatprep.subr.mxu0 0.0
    %96 = vmatpush1.msra.mxu0 0.0
    %97 = vmatprep.subr.mxu0 0.0
    %98 = vmatpush1.msra.mxu0 0.0
    %99 = vmatprep.subr.mxu0 0.0
    %100 = vmatpush1.msra.mxu0 0.0
    %101 = vmatprep.subr.mxu0 0.0
    %102 = vmatpush1.msra.mxu0 0.0
    %103 = vmatprep.subr.mxu0 0.0
    %104 = vmatpush1.msra.mxu0 0.0
    %105 = vmatprep.subr.mxu0 0.0
    %106 = vmatpush1.msra.mxu0 0.0
    %107 = vmatprep.subr.mxu0 0.0
    %108 = vmatpush1.msra.mxu0 0.0
    %109 = vmatprep.subr.mxu0 0.0
    %110 = vmatpush1.msra.mxu0 0.0
    %111 = vmatprep.subr.mxu0 0.0
    %112 = vmatpush1.msra.mxu0 0.0
    %113 = vmatprep.subr.mxu0 0.0
    %114 = vmatpush1.msra.mxu0 0.0
    %115 = vmatprep.subr.mxu0 0.0
    %116 = vmatpush1.msra.mxu0 0.0
    %117 = vmatprep.subr.mxu0 0.0
    %118 = vmatpush1.msra.mxu0 0.0
    %119 = vmatprep.subr.mxu0 0.0
    %120 = vmatpush1.msra.mxu0 0.0
    %121 = vmatprep.subr.mxu0 0.0
    %122 = vmatpush1.msra.mxu0 0.0
    %123 = vmatprep.subr.mxu0 0.0
    %124 = vmatpush1.msra.mxu0 0.0
    %125 = vmatprep.subr.mxu0 0.0
    %126 = vmatpush1.msra.mxu0 0.0
    %127 = vmatprep.subr.mxu0 0.0
    %128 = vmatpush1.msra.mxu0 0.0
    %129 = vmatprep.subr.mxu0 0.0
    %130 = vmatpush1.msra.mxu0 0.0
    %131 = vmatprep.subr.mxu0 0.0
    %132 = vmatpush1.msra.mxu0 0.0
    %133 = vmatprep.subr.mxu0 0.0
    %134 = vmatpush1.msra.mxu0 0.0
    %135 = vmatprep.subr.mxu0 0.0
    %136 = vmatpush1.msra.mxu0 0.0
    %137 = vmatprep.subr.mxu0 0.0
    %138 = vmatpush1.msra.mxu0 0.0
    %139 = vmatprep.mubr.f32.mxu0 0.0
    %140 = vmatmul.mubr.f32.gmra.mrb[0].mxu0 %v70
    %v141 = vpop.f32.mrb[0].mxu0
    %v142 = vadd.f32 %v54, %v141
    %v143 = vpop.f32.mrb[0].mxu0
    %144 = vmatprep.mubr.f32.mxu0 0.0
    %145 = vmatmul.mubr.f32.gmra.mrb[0].mxu0 %v73
    %v146 = vpop.f32.mrb[0].mxu0
    %v147 = vadd.f32 %v55, %v146
    %v148 = vpop.f32.mrb[0].mxu0
    %149 = vdwg.mxu0
    %v150 = vmul.f32 %v142, 0.35355338
    %v151 = vmul.f32 %v147, 0.35355338
    %153 = vrot.lane.b32.xlu0 %v142, 96
    %v154 = vpop.permute.xlu0 %153
    %vm155 = vcmask 64512
    %v157 = vsel %vm155, %v150, 0
    %v159 = vsel %vm155, %v154, 0
    %161 = vmatprep.subr.mxu0 0.0
    %162 = vmatpush1.xpose.msra.mxu0 %v159
    %163 = vmatprep.subr.mxu0 0.0
    %164 = vmatpush1.xpose.msra.mxu0 0.0
    %165 = vmatprep.subr.mxu0 0.0
    %166 = vmatpush1.xpose.msra.mxu0 0.0
    %167 = vmatprep.subr.mxu0 0.0
    %168 = vmatpush1.xpose.msra.mxu0 0.0
    %169 = vmatprep.subr.mxu0 0.0
    %170 = vmatpush1.xpose.msra.mxu0 0.0
    %171 = vmatprep.subr.mxu0 0.0
    %172 = vmatpush1.xpose.msra.mxu0 0.0
    %173 = vmatprep.subr.mxu0 0.0
    %174 = vmatpush1.xpose.msra.mxu0 0.0
    %175 = vmatprep.subr.mxu0 0.0
    %176 = vmatpush1.xpose.msra.mxu0 0.0
    %177 = vmatprep.subr.mxu0 0.0
    %178 = vmatpush1.xpose.msra.mxu0 0.0
    %179 = vmatprep.subr.mxu0 0.0
    %180 = vmatpush1.xpose.msra.mxu0 0.0
    %181 = vmatprep.subr.mxu0 0.0
    %182 = vmatpush1.xpose.msra.mxu0 0.0
    %183 = vmatprep.subr.mxu0 0.0
    %184 = vmatpush1.xpose.msra.mxu0 0.0
    %185 = vmatprep.subr.mxu0 0.0
    %186 = vmatpush1.xpose.msra.mxu0 0.0
    %187 = vmatprep.subr.mxu0 0.0
    %188 = vmatpush1.xpose.msra.mxu0 0.0
    %189 = vmatprep.subr.mxu0 0.0
    %190 = vmatpush1.xpose.msra.mxu0 0.0
    %191 = vmatprep.subr.mxu0 0.0
    %192 = vmatpush1.xpose.msra.mxu0 0.0
    %193 = vmatprep.subr.mxu0 0.0
    %194 = vmatpush1.xpose.msra.mxu0 0.0
    %195 = vmatprep.subr.mxu0 0.0
    %196 = vmatpush1.xpose.msra.mxu0 0.0
    %197 = vmatprep.subr.mxu0 0.0
    %198 = vmatpush1.xpose.msra.mxu0 0.0
    %199 = vmatprep.subr.mxu0 0.0
    %200 = vmatpush1.xpose.msra.mxu0 0.0
    %201 = vmatprep.subr.mxu0 0.0
    %202 = vmatpush1.xpose.msra.mxu0 0.0
    %203 = vmatprep.subr.mxu0 0.0
    %204 = vmatpush1.xpose.msra.mxu0 0.0
    %205 = vmatprep.subr.mxu0 0.0
    %206 = vmatpush1.xpose.msra.mxu0 0.0
    %207 = vmatprep.subr.mxu0 0.0
    %208 = vmatpush1.xpose.msra.mxu0 0.0
    %209 = vmatprep.subr.mxu0 0.0
    %210 = vmatpush1.xpose.msra.mxu0 0.0
    %211 = vmatprep.subr.mxu0 0.0
    %212 = vmatpush1.xpose.msra.mxu0 0.0
    %213 = vmatprep.subr.mxu0 0.0
    %214 = vmatpush1.xpose.msra.mxu0 0.0
    %215 = vmatprep.subr.mxu0 0.0
    %216 = vmatpush1.xpose.msra.mxu0 0.0
    %217 = vmatprep.subr.mxu0 0.0
    %218 = vmatpush1.xpose.msra.mxu0 0.0
    %219 = vmatprep.subr.mxu0 0.0
    %220 = vmatpush1.xpose.msra.mxu0 0.0
    %221 = vmatprep.subr.mxu0 0.0
    %222 = vmatpush1.xpose.msra.mxu0 0.0
    %223 = vmatprep.subr.mxu0 0.0
    %224 = vmatpush1.xpose.msra.mxu0 0.0
    %225 = vmatprep.mubr.f32.mxu0 0.0
    %226 = vmatmul.mubr.f32.gmra.mrb[0].mxu0 %v157
    %v227 = vpop.f32.mrb[0].mxu0
    %v228 = vadd.f32 0.0, %v227
    %v229 = vpop.f32.mrb[0].mxu0
    %230 = vdwg.mxu0
    %232 = vrot.lane.b32.xlu0 %v147, 96
    %v233 = vpop.permute.xlu0 %232
    %v235 = vsel %vm155, %v151, 0
    %v237 = vsel %vm155, %v233, 0
    %239 = vmatprep.subr.mxu0 0.0
    %240 = vmatpush1.xpose.msra.mxu0 %v237
    %241 = vmatprep.subr.mxu0 0.0
    %242 = vmatpush1.xpose.msra.mxu0 0.0
    %243 = vmatprep.subr.mxu0 0.0
    %244 = vmatpush1.xpose.msra.mxu0 0.0
    %245 = vmatprep.subr.mxu0 0.0
    %246 = vmatpush1.xpose.msra.mxu0 0.0
    %247 = vmatprep.subr.mxu0 0.0
    %248 = vmatpush1.xpose.msra.mxu0 0.0
    %249 = vmatprep.subr.mxu0 0.0
    %250 = vmatpush1.xpose.msra.mxu0 0.0
    %251 = vmatprep.subr.mxu0 0.0
    %252 = vmatpush1.xpose.msra.mxu0 0.0
    %253 = vmatprep.subr.mxu0 0.0
    %254 = vmatpush1.xpose.msra.mxu0 0.0
    %255 = vmatprep.subr.mxu0 0.0
    %256 = vmatpush1.xpose.msra.mxu0 0.0
    %257 = vmatprep.subr.mxu0 0.0
    %258 = vmatpush1.xpose.msra.mxu0 0.0
    %259 = vmatprep.subr.mxu0 0.0
    %260 = vmatpush1.xpose.msra.mxu0 0.0
    %261 = vmatprep.subr.mxu0 0.0
    %262 = vmatpush1.xpose.msra.mxu0 0.0
    %263 = vmatprep.subr.mxu0 0.0
    %264 = vmatpush1.xpose.msra.mxu0 0.0
    %265 = vmatprep.subr.mxu0 0.0
    %266 = vmatpush1.xpose.msra.mxu0 0.0
    %267 = vmatprep.subr.mxu0 0.0
    %268 = vmatpush1.xpose.msra.mxu0 0.0
    %269 = vmatprep.subr.mxu0 0.0
    %270 = vmatpush1.xpose.msra.mxu0 0.0
    %271 = vmatprep.subr.mxu0 0.0
    %272 = vmatpush1.xpose.msra.mxu0 0.0
    %273 = vmatprep.subr.mxu0 0.0
    %274 = vmatpush1.xpose.msra.mxu0 0.0
    %275 = vmatprep.subr.mxu0 0.0
    %276 = vmatpush1.xpose.msra.mxu0 0.0
    %277 = vmatprep.subr.mxu0 0.0
    %278 = vmatpush1.xpose.msra.mxu0 0.0
    %279 = vmatprep.subr.mxu0 0.0
    %280 = vmatpush1.xpose.msra.mxu0 0.0
    %281 = vmatprep.subr.mxu0 0.0
    %282 = vmatpush1.xpose.msra.mxu0 0.0
    %283 = vmatprep.subr.mxu0 0.0
    %284 = vmatpush1.xpose.msra.mxu0 0.0
    %285 = vmatprep.subr.mxu0 0.0
    %286 = vmatpush1.xpose.msra.mxu0 0.0
    %287 = vmatprep.subr.mxu0 0.0
    %288 = vmatpush1.xpose.msra.mxu0 0.0
    %289 = vmatprep.subr.mxu0 0.0
    %290 = vmatpush1.xpose.msra.mxu0 0.0
    %291 = vmatprep.subr.mxu0 0.0
    %292 = vmatpush1.xpose.msra.mxu0 0.0
    %293 = vmatprep.subr.mxu0 0.0
    %294 = vmatpush1.xpose.msra.mxu0 0.0
    %295 = vmatprep.subr.mxu0 0.0
    %296 = vmatpush1.xpose.msra.mxu0 0.0
    %297 = vmatprep.subr.mxu0 0.0
    %298 = vmatpush1.xpose.msra.mxu0 0.0
    %299 = vmatprep.subr.mxu0 0.0
    %300 = vmatpush1.xpose.msra.mxu0 0.0
    %301 = vmatprep.subr.mxu0 0.0
    %302 = vmatpush1.xpose.msra.mxu0 0.0
    %303 = vmatprep.mubr.f32.mxu0 0.0
    %304 = vmatmul.mubr.f32.gmra.mrb[0].mxu0 %v235
    %v305 = vpop.f32.mrb[0].mxu0
    %v306 = vadd.f32 0.0, %v305
    %v307 = vpop.f32.mrb[0].mxu0
    %308 = vdwg.mxu0
    %v309 = vsel %vm155, %v228, -inf
    %310 = vmax.xlane.f32.xlu0 %v309
    %v311 = vpop.xlane.xlu0 %310
    %v312 = vsel %vm155, %v306, -inf
    %313 = vmax.xlane.f32.xlu0 %v312
    %v314 = vpop.xlane.xlu0 %313
    %v315 = vsub.f32 %v228, %v311
    %v316 = vsub.f32 %v306, %v314
    %v317 = vmul.f32 %v315, 1.442695
    %v318 = vpow.pop %v317
    %v319 = vmul.f32 %v316, 1.442695
    %v320 = vpow.pop %v319
    %v321 = vsel %vm155, %v318, 0.0
    %322 = vadd.xlane.f32.xlu0 %v321
    %v323 = vpop.xlane.xlu0 %322
    %v324 = vsel %vm155, %v320, 0.0
    %325 = vadd.xlane.f32.xlu0 %v324
    %v326 = vpop.xlane.xlu0 %325
    %v327 = vrcp.pop %v323
    %v328 = vrcp.pop %v326
    %v329 = vmul.f32 %v323, %v327
    %v330 = vmul.f32 %v326, %v328
    %v331 = vsub.f32 2.0, %v329
    %v332 = vsub.f32 2.0, %v330
    %v333 = vmul.f32 %v327, %v331
    %v334 = vmul.f32 %v328, %v332
    %v335 = vmul.f32 %v318, %v333
    %v336 = vmul.f32 %v320, %v334
    %337 = vrot.lane.b32.xlu0 %v142, 64
    %v338 = vpop.permute.xlu0 %337
    %v341 = vsel %vm155, %v335, 0
    %343 = vmatprep.subr.mxu0 0.0
    %344 = vmatpush1.msra.mxu0 %v338
    %345 = vmatprep.subr.mxu0 0.0
    %346 = vmatpush1.msra.mxu0 0.0
    %347 = vmatprep.subr.mxu0 0.0
    %348 = vmatpush1.msra.mxu0 0.0
    %349 = vmatprep.subr.mxu0 0.0
    %350 = vmatpush1.msra.mxu0 0.0
    %351 = vmatprep.subr.mxu0 0.0
    %352 = vmatpush1.msra.mxu0 0.0
    %353 = vmatprep.subr.mxu0 0.0
    %354 = vmatpush1.msra.mxu0 0.0
    %355 = vmatprep.subr.mxu0 0.0
    %356 = vmatpush1.msra.mxu0 0.0
    %357 = vmatprep.subr.mxu0 0.0
    %358 = vmatpush1.msra.mxu0 0.0
    %359 = vmatprep.subr.mxu0 0.0
    %360 = vmatpush1.msra.mxu0 0.0
    %361 = vmatprep.subr.mxu0 0.0
    %362 = vmatpush1.msra.mxu0 0.0
    %363 = vmatprep.subr.mxu0 0.0
    %364 = vmatpush1.msra.mxu0 0.0
    %365 = vmatprep.subr.mxu0 0.0
    %366 = vmatpush1.msra.mxu0 0.0
    %367 = vmatprep.subr.mxu0 0.0
    %368 = vmatpush1.msra.mxu0 0.0
    %369 = vmatprep.subr.mxu0 0.0
    %370 = vmatpush1.msra.mxu0 0.0
    %371 = vmatprep.subr.mxu0 0.0
    %372 = vmatpush1.msra.mxu0 0.0
    %373 = vmatprep.subr.mxu0 0.0
    %374 = vmatpush1.msra.mxu0 0.0
    %375 = vmatprep.subr.mxu0 0.0
    %376 = vmatpush1.msra.mxu0 0.0
    %377 = vmatprep.subr.mxu0 0.0
    %378 = vmatpush1.msra.mxu0 0.0
    %379 = vmatprep.subr.mxu0 0.0
    %380 = vmatpush1.msra.mxu0 0.0
    %381 = vmatprep.subr.mxu0 0.0
    %382 = vmatpush1.msra.mxu0 0.0
    %383 = vmatprep.subr.mxu0 0.0
    %384 = vmatpush1.msra.mxu0 0.0
    %385 = vmatprep.subr.mxu0 0.0
    %386 = vmatpush1.msra.mxu0 0.0
    %387 = vmatprep.subr.mxu0 0.0
    %388 = vmatpush1.msra.mxu0 0.0
    %389 = vmatprep.subr.mxu0 0.0
    %390 = vmatpush1.msra.mxu0 0.0
    %391 = vmatprep.subr.mxu0 0.0
    %392 = vmatpush1.msra.mxu0 0.0
    %393 = vmatprep.subr.mxu0 0.0
    %394 = vmatpush1.msra.mxu0 0.0
    %395 = vmatprep.subr.mxu0 0.0
    %396 = vmatpush1.msra.mxu0 0.0
    %397 = vmatprep.subr.mxu0 0.0
    %398 = vmatpush1.msra.mxu0 0.0
    %399 = vmatprep.subr.mxu0 0.0
    %400 = vmatpush1.msra.mxu0 0.0
    %401 = vmatprep.subr.mxu0 0.0
    %402 = vmatpush1.msra.mxu0 0.0
    %403 = vmatprep.subr.mxu0 0.0
    %404 = vmatpush1.msra.mxu0 0.0
    %405 = vmatprep.subr.mxu0 0.0
    %406 = vmatpush1.msra.mxu0 0.0
    %407 = vmatprep.mubr.f32.mxu0 0.0
    %408 = vmatmul.mubr.f32.gmra.mrb[0].mxu0 %v341
    %v409 = vpop.f32.mrb[0].mxu0
    %v410 = vadd.f32 0.0, %v409
    %v411 = vpop.f32.mrb[0].mxu0
    %412 = vdwg.mxu0
    %413 = vrot.lane.b32.xlu0 %v147, 64
    %v414 = vpop.permute.xlu0 %413
    %v417 = vsel %vm155, %v336, 0
    %419 = vmatprep.subr.mxu0 0.0
    %420 = vmatpush1.msra.mxu0 %v414
    %421 = vmatprep.subr.mxu0 0.0
    %422 = vmatpush1.msra.mxu0 0.0
    %423 = vmatprep.subr.mxu0 0.0
    %424 = vmatpush1.msra.mxu0 0.0
    %425 = vmatprep.subr.mxu0 0.0
    %426 = vmatpush1.msra.mxu0 0.0
    %427 = vmatprep.subr.mxu0 0.0
    %428 = vmatpush1.msra.mxu0 0.0
    %429 = vmatprep.subr.mxu0 0.0
    %430 = vmatpush1.msra.mxu0 0.0
    %431 = vmatprep.subr.mxu0 0.0
    %432 = vmatpush1.msra.mxu0 0.0
    %433 = vmatprep.subr.mxu0 0.0
    %434 = vmatpush1.msra.mxu0 0.0
    %435 = vmatprep.subr.mxu0 0.0
    %436 = vmatpush1.msra.mxu0 0.0
    %437 = vmatprep.subr.mxu0 0.0
    %438 = vmatpush1.msra.mxu0 0.0
    %439 = vmatprep.subr.mxu0 0.0
    %440 = vmatpush1.msra.mxu0 0.0
    %441 = vmatprep.subr.mxu0 0.0
    %442 = vmatpush1.msra.mxu0 0.0
    %443 = vmatprep.subr.mxu0 0.0
    %444 = vmatpush1.msra.mxu0 0.0
    %445 = vmatprep.subr.mxu0 0.0
    %446 = vmatpush1.msra.mxu0 0.0
    %447 = vmatprep.subr.mxu0 0.0
    %448 = vmatpush1.msra.mxu0 0.0
    %449 = vmatprep.subr.mxu0 0.0
    %450 = vmatpush1.msra.mxu0 0.0
    %451 = vmatprep.subr.mxu0 0.0
    %452 = vmatpush1.msra.mxu0 0.0
    %453 = vmatprep.subr.mxu0 0.0
    %454 = vmatpush1.msra.mxu0 0.0
    %455 = vmatprep.subr.mxu0 0.0
    %456 = vmatpush1.msra.mxu0 0.0
    %457 = vmatprep.subr.mxu0 0.0
    %458 = vmatpush1.msra.mxu0 0.0
    %459 = vmatprep.subr.mxu0 0.0
    %460 = vmatpush1.msra.mxu0 0.0
    %461 = vmatprep.subr.mxu0 0.0
    %462 = vmatpush1.msra.mxu0 0.0
    %463 = vmatprep.subr.mxu0 0.0
    %464 = vmatpush1.msra.mxu0 0.0
    %465 = vmatprep.subr.mxu0 0.0
    %466 = vmatpush1.msra.mxu0 0.0
    %467 = vmatprep.subr.mxu0 0.0
    %468 = vmatpush1.msra.mxu0 0.0
    %469 = vmatprep.subr.mxu0 0.0
    %470 = vmatpush1.msra.mxu0 0.0
    %471 = vmatprep.subr.mxu0 0.0
    %472 = vmatpush1.msra.mxu0 0.0
    %473 = vmatprep.subr.mxu0 0.0
    %474 = vmatpush1.msra.mxu0 0.0
    %475 = vmatprep.subr.mxu0 0.0
    %476 = vmatpush1.msra.mxu0 0.0
    %477 = vmatprep.subr.mxu0 0.0
    %478 = vmatpush1.msra.mxu0 0.0
    %479 = vmatprep.subr.mxu0 0.0
    %480 = vmatpush1.msra.mxu0 0.0
    %481 = vmatprep.subr.mxu0 0.0
    %482 = vmatpush1.msra.mxu0 0.0
    %483 = vmatprep.mubr.f32.mxu0 0.0
    %484 = vmatmul.mubr.f32.gmra.mrb[0].mxu0 %v417
    %v485 = vpop.f32.mrb[0].mxu0
    %v486 = vadd.f32 0.0, %v485
    %v487 = vpop.f32.mrb[0].mxu0
    %488 = vdwg.mxu0
    %489 = vrot.lane.b32.xlu0 %v150, 120
    %v490 = vpop.permute.xlu0 %489
    %491 = vrot.lane.b32.xlu0 %v142, 88
    %v492 = vpop.permute.xlu0 %491
    %v493 = vsel %vm155, %v490, 0
    %v495 = vsel %vm155, %v492, 0
    %497 = vmatprep.subr.mxu0 0.0
    %498 = vmatpush1.xpose.msra.mxu0 %v495
    %499 = vmatprep.subr.mxu0 0.0
    %500 = vmatpush1.xpose.msra.mxu0 0.0
    %501 = vmatprep.subr.mxu0 0.0
    %502 = vmatpush1.xpose.msra.mxu0 0.0
    %503 = vmatprep.subr.mxu0 0.0
    %504 = vmatpush1.xpose.msra.mxu0 0.0
    %505 = vmatprep.subr.mxu0 0.0
    %506 = vmatpush1.xpose.msra.mxu0 0.0
    %507 = vmatprep.subr.mxu0 0.0
    %508 = vmatpush1.xpose.msra.mxu0 0.0
    %509 = vmatprep.subr.mxu0 0.0
    %510 = vmatpush1.xpose.msra.mxu0 0.0
    %511 = vmatprep.subr.mxu0 0.0
    %512 = vmatpush1.xpose.msra.mxu0 0.0
    %513 = vmatprep.subr.mxu0 0.0
    %514 = vmatpush1.xpose.msra.mxu0 0.0
    %515 = vmatprep.subr.mxu0 0.0
    %516 = vmatpush1.xpose.msra.mxu0 0.0
    %517 = vmatprep.subr.mxu0 0.0
    %518 = vmatpush1.xpose.msra.mxu0 0.0
    %519 = vmatprep.subr.mxu0 0.0
    %520 = vmatpush1.xpose.msra.mxu0 0.0
    %521 = vmatprep.subr.mxu0 0.0
    %522 = vmatpush1.xpose.msra.mxu0 0.0
    %523 = vmatprep.subr.mxu0 0.0
    %524 = vmatpush1.xpose.msra.mxu0 0.0
    %525 = vmatprep.subr.mxu0 0.0
    %526 = vmatpush1.xpose.msra.mxu0 0.0
    %527 = vmatprep.subr.mxu0 0.0
    %528 = vmatpush1.xpose.msra.mxu0 0.0
    %529 = vmatprep.subr.mxu0 0.0
    %530 = vmatpush1.xpose.msra.mxu0 0.0
    %531 = vmatprep.subr.mxu0 0.0
    %532 = vmatpush1.xpose.msra.mxu0 0.0
    %533 = vmatprep.subr.mxu0 0.0
    %534 = vmatpush1.xpose.msra.mxu0 0.0
    %535 = vmatprep.subr.mxu0 0.0
    %536 = vmatpush1.xpose.msra.mxu0 0.0
    %537 = vmatprep.subr.mxu0 0.0
    %538 = vmatpush1.xpose.msra.mxu0 0.0
    %539 = vmatprep.subr.mxu0 0.0
    %540 = vmatpush1.xpose.msra.mxu0 0.0
    %541 = vmatprep.subr.mxu0 0.0
    %542 = vmatpush1.xpose.msra.mxu0 0.0
    %543 = vmatprep.subr.mxu0 0.0
    %544 = vmatpush1.xpose.msra.mxu0 0.0
    %545 = vmatprep.subr.mxu0 0.0
    %546 = vmatpush1.xpose.msra.mxu0 0.0
    %547 = vmatprep.subr.mxu0 0.0
    %548 = vmatpush1.xpose.msra.mxu0 0.0
    %549 = vmatprep.subr.mxu0 0.0
    %550 = vmatpush1.xpose.msra.mxu0 0.0
    %551 = vmatprep.subr.mxu0 0.0
    %552 = vmatpush1.xpose.msra.mxu0 0.0
    %553 = vmatprep.subr.mxu0 0.0
    %554 = vmatpush1.xpose.msra.mxu0 0.0
    %555 = vmatprep.subr.mxu0 0.0
    %556 = vmatpush1.xpose.msra.mxu0 0.0
    %557 = vmatprep.subr.mxu0 0.0
    %558 = vmatpush1.xpose.msra.mxu0 0.0
    %559 = vmatprep.subr.mxu0 0.0
    %560 = vmatpush1.xpose.msra.mxu0 0.0
    %561 = vmatprep.mubr.f32.mxu0 0.0
    %562 = vmatmul.mubr.f32.gmra.mrb[0].mxu0 %v493
    %v563 = vpop.f32.mrb[0].mxu0
    %v564 = vadd.f32 0.0, %v563
    %v565 = vpop.f32.mrb[0].mxu0
    %566 = vdwg.mxu0
    %567 = vrot.lane.b32.xlu0 %v151, 120
    %v568 = vpop.permute.xlu0 %567
    %569 = vrot.lane.b32.xlu0 %v147, 88
    %v570 = vpop.permute.xlu0 %569
    %v571 = vsel %vm155, %v568, 0
    %v573 = vsel %vm155, %v570, 0
    %575 = vmatprep.subr.mxu0 0.0
    %576 = vmatpush1.xpose.msra.mxu0 %v573
    %577 = vmatprep.subr.mxu0 0.0
    %578 = vmatpush1.xpose.msra.mxu0 0.0
    %579 = vmatprep.subr.mxu0 0.0
    %580 = vmatpush1.xpose.msra.mxu0 0.0
    %581 = vmatprep.subr.mxu0 0.0
    %582 = vmatpush1.xpose.msra.mxu0 0.0
    %583 = vmatprep.subr.mxu0 0.0
    %584 = vmatpush1.xpose.msra.mxu0 0.0
    %585 = vmatprep.subr.mxu0 0.0
    %586 = vmatpush1.xpose.msra.mxu0 0.0
    %587 = vmatprep.subr.mxu0 0.0
    %588 = vmatpush1.xpose.msra.mxu0 0.0
    %589 = vmatprep.subr.mxu0 0.0
    %590 = vmatpush1.xpose.msra.mxu0 0.0
    %591 = vmatprep.subr.mxu0 0.0
    %592 = vmatpush1.xpose.msra.mxu0 0.0
    %593 = vmatprep.subr.mxu0 0.0
    %594 = vmatpush1.xpose.msra.mxu0 0.0
    %595 = vmatprep.subr.mxu0 0.0
    %596 = vmatpush1.xpose.msra.mxu0 0.0
    %597 = vmatprep.subr.mxu0 0.0
    %598 = vmatpush1.xpose.msra.mxu0 0.0
    %599 = vmatprep.subr.mxu0 0.0
    %600 = vmatpush1.xpose.msra.mxu0 0.0
    %601 = vmatprep.subr.mxu0 0.0
    %602 = vmatpush1.xpose.msra.mxu0 0.0
    %603 = vmatprep.subr.mxu0 0.0
    %604 = vmatpush1.xpose.msra.mxu0 0.0
    %605 = vmatprep.subr.mxu0 0.0
    %606 = vmatpush1.xpose.msra.mxu0 0.0
    %607 = vmatprep.subr.mxu0 0.0
    %608 = vmatpush1.xpose.msra.mxu0 0.0
    %609 = vmatprep.subr.mxu0 0.0
    %610 = vmatpush1.xpose.msra.mxu0 0.0
    %611 = vmatprep.subr.mxu0 0.0
    %612 = vmatpush1.xpose.msra.mxu0 0.0
    %613 = vmatprep.subr.mxu0 0.0
    %614 = vmatpush1.xpose.msra.mxu0 0.0
    %615 = vmatprep.subr.mxu0 0.0
    %616 = vmatpush1.xpose.msra.mxu0 0.0
    %617 = vmatprep.subr.mxu0 0.0
    %618 = vmatpush1.xpose.msra.mxu0 0.0
    %619 = vmatprep.subr.mxu0 0.0
    %620 = vmatpush1.xpose.msra.mxu0 0.0
    %621 = vmatprep.subr.mxu0 0.0
    %622 = vmatpush1.xpose.msra.mxu0 0.0
    %623 = vmatprep.subr.mxu0 0.0
    %624 = vmatpush1.xpose.msra.mxu0 0.0
    %625 = vmatprep.subr.mxu0 0.0
    %626 = vmatpush1.xpose.msra.mxu0 0.0
    %627 = vmatprep.subr.mxu0 0.0
    %628 = vmatpush1.xpose.msra.mxu0 0.0
    %629 = vmatprep.subr.mxu0 0.0
    %630 = vmatpush1.xpose.msra.mxu0 0.0
    %631 = vmatprep.subr.mxu0 0.0
    %632 = vmatpush1.xpose.msra.mxu0 0.0
    %633 = vmatprep.subr.mxu0 0.0
    %634 = vmatpush1.xpose.msra.mxu0 0.0
    %635 = vmatprep.subr.mxu0 0.0
    %636 = vmatpush1.xpose.msra.mxu0 0.0
    %637 = vmatprep.subr.mxu0 0.0
    %638 = vmatpush1.xpose.msra.mxu0 0.0
    %639 = vmatprep.mubr.f32.mxu0 0.0
    %640 = vmatmul.mubr.f32.gmra.mrb[0].mxu0 %v571
    %v641 = vpop.f32.mrb[0].mxu0
    %v642 = vadd.f32 0.0, %v641
    %v643 = vpop.f32.mrb[0].mxu0
    %644 = vdwg.mxu0
    %v645 = vsel %vm155, %v564, -inf
    %646 = vmax.xlane.f32.xlu0 %v645
    %v647 = vpop.xlane.xlu0 %646
    %v648 = vsel %vm155, %v642, -inf
    %649 = vmax.xlane.f32.xlu0 %v648
    %v650 = vpop.xlane.xlu0 %649
    %v651 = vsub.f32 %v564, %v647
    %v652 = vsub.f32 %v642, %v650
    %v653 = vmul.f32 %v651, 1.442695
    %v654 = vpow.pop %v653
    %v655 = vmul.f32 %v652, 1.442695
    %v656 = vpow.pop %v655
    %v657 = vsel %vm155, %v654, 0.0
    %658 = vadd.xlane.f32.xlu0 %v657
    %v659 = vpop.xlane.xlu0 %658
    %v660 = vsel %vm155, %v656, 0.0
    %661 = vadd.xlane.f32.xlu0 %v660
    %v662 = vpop.xlane.xlu0 %661
    %v663 = vrcp.pop %v659
    %v664 = vrcp.pop %v662
    %v665 = vmul.f32 %v659, %v663
    %v666 = vmul.f32 %v662, %v664
    %v667 = vsub.f32 2.0, %v665
    %v668 = vsub.f32 2.0, %v666
    %v669 = vmul.f32 %v663, %v667
    %v670 = vmul.f32 %v664, %v668
    %v671 = vmul.f32 %v654, %v669
    %v672 = vmul.f32 %v656, %v670
    %673 = vrot.lane.b32.xlu0 %v142, 56
    %v674 = vpop.permute.xlu0 %673
    %v677 = vsel %vm155, %v671, 0
    %679 = vmatprep.subr.mxu0 0.0
    %680 = vmatpush1.msra.mxu0 %v674
    %681 = vmatprep.subr.mxu0 0.0
    %682 = vmatpush1.msra.mxu0 0.0
    %683 = vmatprep.subr.mxu0 0.0
    %684 = vmatpush1.msra.mxu0 0.0
    %685 = vmatprep.subr.mxu0 0.0
    %686 = vmatpush1.msra.mxu0 0.0
    %687 = vmatprep.subr.mxu0 0.0
    %688 = vmatpush1.msra.mxu0 0.0
    %689 = vmatprep.subr.mxu0 0.0
    %690 = vmatpush1.msra.mxu0 0.0
    %691 = vmatprep.subr.mxu0 0.0
    %692 = vmatpush1.msra.mxu0 0.0
    %693 = vmatprep.subr.mxu0 0.0
    %694 = vmatpush1.msra.mxu0 0.0
    %695 = vmatprep.subr.mxu0 0.0
    %696 = vmatpush1.msra.mxu0 0.0
    %697 = vmatprep.subr.mxu0 0.0
    %698 = vmatpush1.msra.mxu0 0.0
    %699 = vmatprep.subr.mxu0 0.0
    %700 = vmatpush1.msra.mxu0 0.0
    %701 = vmatprep.subr.mxu0 0.0
    %702 = vmatpush1.msra.mxu0 0.0
    %703 = vmatprep.subr.mxu0 0.0
    %704 = vmatpush1.msra.mxu0 0.0
    %705 = vmatprep.subr.mxu0 0.0
    %706 = vmatpush1.msra.mxu0 0.0
    %707 = vmatprep.subr.mxu0 0.0
    %708 = vmatpush1.msra.mxu0 0.0
    %709 = vmatprep.subr.mxu0 0.0
    %710 = vmatpush1.msra.mxu0 0.0
    %711 = vmatprep.subr.mxu0 0.0
    %712 = vmatpush1.msra.mxu0 0.0
    %713 = vmatprep.subr.mxu0 0.0
    %714 = vmatpush1.msra.mxu0 0.0
    %715 = vmatprep.subr.mxu0 0.0
    %716 = vmatpush1.msra.mxu0 0.0
    %717 = vmatprep.subr.mxu0 0.0
    %718 = vmatpush1.msra.mxu0 0.0
    %719 = vmatprep.subr.mxu0 0.0
    %720 = vmatpush1.msra.mxu0 0.0
    %721 = vmatprep.subr.mxu0 0.0
    %722 = vmatpush1.msra.mxu0 0.0
    %723 = vmatprep.subr.mxu0 0.0
    %724 = vmatpush1.msra.mxu0 0.0
    %725 = vmatprep.subr.mxu0 0.0
    %726 = vmatpush1.msra.mxu0 0.0
    %727 = vmatprep.subr.mxu0 0.0
    %728 = vmatpush1.msra.mxu0 0.0
    %729 = vmatprep.subr.mxu0 0.0
    %730 = vmatpush1.msra.mxu0 0.0
    %731 = vmatprep.subr.mxu0 0.0
    %732 = vmatpush1.msra.mxu0 0.0
    %733 = vmatprep.subr.mxu0 0.0
    %734 = vmatpush1.msra.mxu0 0.0
    %735 = vmatprep.subr.mxu0 0.0
    %736 = vmatpush1.msra.mxu0 0.0
    %737 = vmatprep.subr.mxu0 0.0
    %738 = vmatpush1.msra.mxu0 0.0
    %739 = vmatprep.subr.mxu0 0.0
    %740 = vmatpush1.msra.mxu0 0.0
    %741 = vmatprep.subr.mxu0 0.0
    %742 = vmatpush1.msra.mxu0 0.0
    %743 = vmatprep.mubr.f32.mxu0 0.0
    %744 = vmatmul.mubr.f32.gmra.mrb[0].mxu0 %v677
    %v745 = vpop.f32.mrb[0].mxu0
    %v746 = vadd.f32 0.0, %v745
    %v747 = vpop.f32.mrb[0].mxu0
    %748 = vdwg.mxu0
    %749 = vrot.lane.b32.xlu0 %v147, 56
    %v750 = vpop.permute.xlu0 %749
    %v753 = vsel %vm155, %v672, 0
    %755 = vmatprep.subr.mxu0 0.0
    %756 = vmatpush1.msra.mxu0 %v750
    %757 = vmatprep.subr.mxu0 0.0
    %758 = vmatpush1.msra.mxu0 0.0
    %759 = vmatprep.subr.mxu0 0.0
    %760 = vmatpush1.msra.mxu0 0.0
    %761 = vmatprep.subr.mxu0 0.0
    %762 = vmatpush1.msra.mxu0 0.0
    %763 = vmatprep.subr.mxu0 0.0
    %764 = vmatpush1.msra.mxu0 0.0
    %765 = vmatprep.subr.mxu0 0.0
    %766 = vmatpush1.msra.mxu0 0.0
    %767 = vmatprep.subr.mxu0 0.0
    %768 = vmatpush1.msra.mxu0 0.0
    %769 = vmatprep.subr.mxu0 0.0
    %770 = vmatpush1.msra.mxu0 0.0
    %771 = vmatprep.subr.mxu0 0.0
    %772 = vmatpush1.msra.mxu0 0.0
    %773 = vmatprep.subr.mxu0 0.0
    %774 = vmatpush1.msra.mxu0 0.0
    %775 = vmatprep.subr.mxu0 0.0
    %776 = vmatpush1.msra.mxu0 0.0
    %777 = vmatprep.subr.mxu0 0.0
    %778 = vmatpush1.msra.mxu0 0.0
    %779 = vmatprep.subr.mxu0 0.0
    %780 = vmatpush1.msra.mxu0 0.0
    %781 = vmatprep.subr.mxu0 0.0
    %782 = vmatpush1.msra.mxu0 0.0
    %783 = vmatprep.subr.mxu0 0.0
    %784 = vmatpush1.msra.mxu0 0.0
    %785 = vmatprep.subr.mxu0 0.0
    %786 = vmatpush1.msra.mxu0 0.0
    %787 = vmatprep.subr.mxu0 0.0
    %788 = vmatpush1.msra.mxu0 0.0
    %789 = vmatprep.subr.mxu0 0.0
    %790 = vmatpush1.msra.mxu0 0.0
    %791 = vmatprep.subr.mxu0 0.0
    %792 = vmatpush1.msra.mxu0 0.0
    %793 = vmatprep.subr.mxu0 0.0
    %794 = vmatpush1.msra.mxu0 0.0
    %795 = vmatprep.subr.mxu0 0.0
    %796 = vmatpush1.msra.mxu0 0.0
    %797 = vmatprep.subr.mxu0 0.0
    %798 = vmatpush1.msra.mxu0 0.0
    %799 = vmatprep.subr.mxu0 0.0
    %800 = vmatpush1.msra.mxu0 0.0
    %801 = vmatprep.subr.mxu0 0.0
    %802 = vmatpush1.msra.mxu0 0.0
    %803 = vmatprep.subr.mxu0 0.0
    %804 = vmatpush1.msra.mxu0 0.0
    %805 = vmatprep.subr.mxu0 0.0
    %806 = vmatpush1.msra.mxu0 0.0
    %807 = vmatprep.subr.mxu0 0.0
    %808 = vmatpush1.msra.mxu0 0.0
    %809 = vmatprep.subr.mxu0 0.0
    %810 = vmatpush1.msra.mxu0 0.0
    %811 = vmatprep.subr.mxu0 0.0
    %812 = vmatpush1.msra.mxu0 0.0
    %813 = vmatprep.subr.mxu0 0.0
    %814 = vmatpush1.msra.mxu0 0.0
    %815 = vmatprep.subr.mxu0 0.0
    %816 = vmatpush1.msra.mxu0 0.0
    %817 = vmatprep.subr.mxu0 0.0
    %818 = vmatpush1.msra.mxu0 0.0
    %819 = vmatprep.mubr.f32.mxu0 0.0
    %820 = vmatmul.mubr.f32.gmra.mrb[0].mxu0 %v753
    %v821 = vpop.f32.mrb[0].mxu0
    %v822 = vadd.f32 0.0, %v821
    %v823 = vpop.f32.mrb[0].mxu0
    %824 = vdwg.mxu0
    %825 = vrot.lane.b32.xlu0 %v150, 112
    %v826 = vpop.permute.xlu0 %825
    %827 = vrot.lane.b32.xlu0 %v142, 80
    %v828 = vpop.permute.xlu0 %827
    %v829 = vsel %vm155, %v826, 0
    %v831 = vsel %vm155, %v828, 0
    %833 = vmatprep.subr.mxu0 0.0
    %834 = vmatpush1.xpose.msra.mxu0 %v831
    %835 = vmatprep.subr.mxu0 0.0
    %836 = vmatpush1.xpose.msra.mxu0 0.0
    %837 = vmatprep.subr.mxu0 0.0
    %838 = vmatpush1.xpose.msra.mxu0 0.0
    %839 = vmatprep.subr.mxu0 0.0
    %840 = vmatpush1.xpose.msra.mxu0 0.0
    %841 = vmatprep.subr.mxu0 0.0
    %842 = vmatpush1.xpose.msra.mxu0 0.0
    %843 = vmatprep.subr.mxu0 0.0
    %844 = vmatpush1.xpose.msra.mxu0 0.0
    %845 = vmatprep.subr.mxu0 0.0
    %846 = vmatpush1.xpose.msra.mxu0 0.0
    %847 = vmatprep.subr.mxu0 0.0
    %848 = vmatpush1.xpose.msra.mxu0 0.0
    %849 = vmatprep.subr.mxu0 0.0
    %850 = vmatpush1.xpose.msra.mxu0 0.0
    %851 = vmatprep.subr.mxu0 0.0
    %852 = vmatpush1.xpose.msra.mxu0 0.0
    %853 = vmatprep.subr.mxu0 0.0
    %854 = vmatpush1.xpose.msra.mxu0 0.0
    %855 = vmatprep.subr.mxu0 0.0
    %856 = vmatpush1.xpose.msra.mxu0 0.0
    %857 = vmatprep.subr.mxu0 0.0
    %858 = vmatpush1.xpose.msra.mxu0 0.0
    %859 = vmatprep.subr.mxu0 0.0
    %860 = vmatpush1.xpose.msra.mxu0 0.0
    %861 = vmatprep.subr.mxu0 0.0
    %862 = vmatpush1.xpose.msra.mxu0 0.0
    %863 = vmatprep.subr.mxu0 0.0
    %864 = vmatpush1.xpose.msra.mxu0 0.0
    %865 = vmatprep.subr.mxu0 0.0
    %866 = vmatpush1.xpose.msra.mxu0 0.0
    %867 = vmatprep.subr.mxu0 0.0
    %868 = vmatpush1.xpose.msra.mxu0 0.0
    %869 = vmatprep.subr.mxu0 0.0
    %870 = vmatpush1.xpose.msra.mxu0 0.0
    %871 = vmatprep.subr.mxu0 0.0
    %872 = vmatpush1.xpose.msra.mxu0 0.0
    %873 = vmatprep.subr.mxu0 0.0
    %874 = vmatpush1.xpose.msra.mxu0 0.0
    %875 = vmatprep.subr.mxu0 0.0
    %876 = vmatpush1.xpose.msra.mxu0 0.0
    %877 = vmatprep.subr.mxu0 0.0
    %878 = vmatpush1.xpose.msra.mxu0 0.0
    %879 = vmatprep.subr.mxu0 0.0
    %880 = vmatpush1.xpose.msra.mxu0 0.0
    %881 = vmatprep.subr.mxu0 0.0
    %882 = vmatpush1.xpose.msra.mxu0 0.0
    %883 = vmatprep.subr.mxu0 0.0
    %884 = vmatpush1.xpose.msra.mxu0 0.0
    %885 = vmatprep.subr.mxu0 0.0
    %886 = vmatpush1.xpose.msra.mxu0 0.0
    %887 = vmatprep.subr.mxu0 0.0
    %888 = vmatpush1.xpose.msra.mxu0 0.0
    %889 = vmatprep.subr.mxu0 0.0
    %890 = vmatpush1.xpose.msra.mxu0 0.0
    %891 = vmatprep.subr.mxu0 0.0
    %892 = vmatpush1.xpose.msra.mxu0 0.0
    %893 = vmatprep.subr.mxu0 0.0
    %894 = vmatpush1.xpose.msra.mxu0 0.0
    %895 = vmatprep.subr.mxu0 0.0
    %896 = vmatpush1.xpose.msra.mxu0 0.0
    %897 = vmatprep.mubr.f32.mxu0 0.0
    %898 = vmatmul.mubr.f32.gmra.mrb[0].mxu0 %v829
    %v899 = vpop.f32.mrb[0].mxu0
    %v900 = vadd.f32 0.0, %v899
    %v901 = vpop.f32.mrb[0].mxu0
    %902 = vdwg.mxu0
    %903 = vrot.lane.b32.xlu0 %v151, 112
    %v904 = vpop.permute.xlu0 %903
    %905 = vrot.lane.b32.xlu0 %v147, 80
    %v906 = vpop.permute.xlu0 %905
    %v907 = vsel %vm155, %v904, 0
    %v909 = vsel %vm155, %v906, 0
    %911 = vmatprep.subr.mxu0 0.0
    %912 = vmatpush1.xpose.msra.mxu0 %v909
    %913 = vmatprep.subr.mxu0 0.0
    %914 = vmatpush1.xpose.msra.mxu0 0.0
    %915 = vmatprep.subr.mxu0 0.0
    %916 = vmatpush1.xpose.msra.mxu0 0.0
    %917 = vmatprep.subr.mxu0 0.0
    %918 = vmatpush1.xpose.msra.mxu0 0.0
    %919 = vmatprep.subr.mxu0 0.0
    %920 = vmatpush1.xpose.msra.mxu0 0.0
    %921 = vmatprep.subr.mxu0 0.0
    %922 = vmatpush1.xpose.msra.mxu0 0.0
    %923 = vmatprep.subr.mxu0 0.0
    %924 = vmatpush1.xpose.msra.mxu0 0.0
    %925 = vmatprep.subr.mxu0 0.0
    %926 = vmatpush1.xpose.msra.mxu0 0.0
    %927 = vmatprep.subr.mxu0 0.0
    %928 = vmatpush1.xpose.msra.mxu0 0.0
    %929 = vmatprep.subr.mxu0 0.0
    %930 = vmatpush1.xpose.msra.mxu0 0.0
    %931 = vmatprep.subr.mxu0 0.0
    %932 = vmatpush1.xpose.msra.mxu0 0.0
    %933 = vmatprep.subr.mxu0 0.0
    %934 = vmatpush1.xpose.msra.mxu0 0.0
    %935 = vmatprep.subr.mxu0 0.0
    %936 = vmatpush1.xpose.msra.mxu0 0.0
    %937 = vmatprep.subr.mxu0 0.0
    %938 = vmatpush1.xpose.msra.mxu0 0.0
    %939 = vmatprep.subr.mxu0 0.0
    %940 = vmatpush1.xpose.msra.mxu0 0.0
    %941 = vmatprep.subr.mxu0 0.0
    %942 = vmatpush1.xpose.msra.mxu0 0.0
    %943 = vmatprep.subr.mxu0 0.0
    %944 = vmatpush1.xpose.msra.mxu0 0.0
    %945 = vmatprep.subr.mxu0 0.0
    %946 = vmatpush1.xpose.msra.mxu0 0.0
    %947 = vmatprep.subr.mxu0 0.0
    %948 = vmatpush1.xpose.msra.mxu0 0.0
    %949 = vmatprep.subr.mxu0 0.0
    %950 = vmatpush1.xpose.msra.mxu0 0.0
    %951 = vmatprep.subr.mxu0 0.0
    %952 = vmatpush1.xpose.msra.mxu0 0.0
    %953 = vmatprep.subr.mxu0 0.0
    %954 = vmatpush1.xpose.msra.mxu0 0.0
    %955 = vmatprep.subr.mxu0 0.0
    %956 = vmatpush1.xpose.msra.mxu0 0.0
    %957 = vmatprep.subr.mxu0 0.0
    %958 = vmatpush1.xpose.msra.mxu0 0.0
    %959 = vmatprep.subr.mxu0 0.0
    %960 = vmatpush1.xpose.msra.mxu0 0.0
    %961 = vmatprep.subr.mxu0 0.0
    %962 = vmatpush1.xpose.msra.mxu0 0.0
    %963 = vmatprep.subr.mxu0 0.0
    %964 = vmatpush1.xpose.msra.mxu0 0.0
    %965 = vmatprep.subr.mxu0 0.0
    %966 = vmatpush1.xpose.msra.mxu0 0.0
    %967 = vmatprep.subr.mxu0 0.0
    %968 = vmatpush1.xpose.msra.mxu0 0.0
    %969 = vmatprep.subr.mxu0 0.0
    %970 = vmatpush1.xpose.msra.mxu0 0.0
    %971 = vmatprep.subr.mxu0 0.0
    %972 = vmatpush1.xpose.msra.mxu0 0.0
    %973 = vmatprep.subr.mxu0 0.0
    %974 = vmatpush1.xpose.msra.mxu0 0.0
    %975 = vmatprep.mubr.f32.mxu0 0.0
    %976 = vmatmul.mubr.f32.gmra.mrb[0].mxu0 %v907
    %v977 = vpop.f32.mrb[0].mxu0
    %v978 = vadd.f32 0.0, %v977
    %v979 = vpop.f32.mrb[0].mxu0
    %980 = vdwg.mxu0
    %v981 = vsel %vm155, %v900, -inf
    %982 = vmax.xlane.f32.xlu0 %v981
    %v983 = vpop.xlane.xlu0 %982
    %v984 = vsel %vm155, %v978, -inf
    %985 = vmax.xlane.f32.xlu0 %v984
    %v986 = vpop.xlane.xlu0 %985
    %v987 = vsub.f32 %v900, %v983
    %v988 = vsub.f32 %v978, %v986
    %v989 = vmul.f32 %v987, 1.442695
    %v990 = vpow.pop %v989
    %v991 = vmul.f32 %v988, 1.442695
    %v992 = vpow.pop %v991
    %v993 = vsel %vm155, %v990, 0.0
    %994 = vadd.xlane.f32.xlu0 %v993
    %v995 = vpop.xlane.xlu0 %994
    %v996 = vsel %vm155, %v992, 0.0
    %997 = vadd.xlane.f32.xlu0 %v996
    %v998 = vpop.xlane.xlu0 %997
    %v999 = vrcp.pop %v995
    %v1000 = vrcp.pop %v998
    %v1001 = vmul.f32 %v995, %v999
    %v1002 = vmul.f32 %v998, %v1000
    %v1003 = vsub.f32 2.0, %v1001
    %v1004 = vsub.f32 2.0, %v1002
    %v1005 = vmul.f32 %v999, %v1003
    %v1006 = vmul.f32 %v1000, %v1004
    %v1007 = vmul.f32 %v990, %v1005
    %v1008 = vmul.f32 %v992, %v1006
    %1009 = vrot.lane.b32.xlu0 %v142, 48
    %v1010 = vpop.permute.xlu0 %1009
    %v1013 = vsel %vm155, %v1007, 0
    %1015 = vmatprep.subr.mxu0 0.0
    %1016 = vmatpush1.msra.mxu0 %v1010
    %1017 = vmatprep.subr.mxu0 0.0
    %1018 = vmatpush1.msra.mxu0 0.0
    %1019 = vmatprep.subr.mxu0 0.0
    %1020 = vmatpush1.msra.mxu0 0.0
    %1021 = vmatprep.subr.mxu0 0.0
    %1022 = vmatpush1.msra.mxu0 0.0
    %1023 = vmatprep.subr.mxu0 0.0
    %1024 = vmatpush1.msra.mxu0 0.0
    %1025 = vmatprep.subr.mxu0 0.0
    %1026 = vmatpush1.msra.mxu0 0.0
    %1027 = vmatprep.subr.mxu0 0.0
    %1028 = vmatpush1.msra.mxu0 0.0
    %1029 = vmatprep.subr.mxu0 0.0
    %1030 = vmatpush1.msra.mxu0 0.0
    %1031 = vmatprep.subr.mxu0 0.0
    %1032 = vmatpush1.msra.mxu0 0.0
    %1033 = vmatprep.subr.mxu0 0.0
    %1034 = vmatpush1.msra.mxu0 0.0
    %1035 = vmatprep.subr.mxu0 0.0
    %1036 = vmatpush1.msra.mxu0 0.0
    %1037 = vmatprep.subr.mxu0 0.0
    %1038 = vmatpush1.msra.mxu0 0.0
    %1039 = vmatprep.subr.mxu0 0.0
    %1040 = vmatpush1.msra.mxu0 0.0
    %1041 = vmatprep.subr.mxu0 0.0
    %1042 = vmatpush1.msra.mxu0 0.0
    %1043 = vmatprep.subr.mxu0 0.0
    %1044 = vmatpush1.msra.mxu0 0.0
    %1045 = vmatprep.subr.mxu0 0.0
    %1046 = vmatpush1.msra.mxu0 0.0
    %1047 = vmatprep.subr.mxu0 0.0
    %1048 = vmatpush1.msra.mxu0 0.0
    %1049 = vmatprep.subr.mxu0 0.0
    %1050 = vmatpush1.msra.mxu0 0.0
    %1051 = vmatprep.subr.mxu0 0.0
    %1052 = vmatpush1.msra.mxu0 0.0
    %1053 = vmatprep.subr.mxu0 0.0
    %1054 = vmatpush1.msra.mxu0 0.0
    %1055 = vmatprep.subr.mxu0 0.0
    %1056 = vmatpush1.msra.mxu0 0.0
    %1057 = vmatprep.subr.mxu0 0.0
    %1058 = vmatpush1.msra.mxu0 0.0
    %1059 = vmatprep.subr.mxu0 0.0
    %1060 = vmatpush1.msra.mxu0 0.0
    %1061 = vmatprep.subr.mxu0 0.0
    %1062 = vmatpush1.msra.mxu0 0.0
    %1063 = vmatprep.subr.mxu0 0.0
    %1064 = vmatpush1.msra.mxu0 0.0
    %1065 = vmatprep.subr.mxu0 0.0
    %1066 = vmatpush1.msra.mxu0 0.0
    %1067 = vmatprep.subr.mxu0 0.0
    %1068 = vmatpush1.msra.mxu0 0.0
    %1069 = vmatprep.subr.mxu0 0.0
    %1070 = vmatpush1.msra.mxu0 0.0
    %1071 = vmatprep.subr.mxu0 0.0
    %1072 = vmatpush1.msra.mxu0 0.0
    %1073 = vmatprep.subr.mxu0 0.0
    %1074 = vmatpush1.msra.mxu0 0.0
    %1075 = vmatprep.subr.mxu0 0.0
    %1076 = vmatpush1.msra.mxu0 0.0
    %1077 = vmatprep.subr.mxu0 0.0
    %1078 = vmatpush1.msra.mxu0 0.0
    %1079 = vmatprep.mubr.f32.mxu0 0.0
    %1080 = vmatmul.mubr.f32.gmra.mrb[0].mxu0 %v1013
    %v1081 = vpop.f32.mrb[0].mxu0
    %v1082 = vadd.f32 0.0, %v1081
    %v1083 = vpop.f32.mrb[0].mxu0
    %1084 = vdwg.mxu0
    %1085 = vrot.lane.b32.xlu0 %v147, 48
    %v1086 = vpop.permute.xlu0 %1085
    %v1089 = vsel %vm155, %v1008, 0
    %1091 = vmatprep.subr.mxu0 0.0
    %1092 = vmatpush1.msra.mxu0 %v1086
    %1093 = vmatprep.subr.mxu0 0.0
    %1094 = vmatpush1.msra.mxu0 0.0
    %1095 = vmatprep.subr.mxu0 0.0
    %1096 = vmatpush1.msra.mxu0 0.0
    %1097 = vmatprep.subr.mxu0 0.0
    %1098 = vmatpush1.msra.mxu0 0.0
    %1099 = vmatprep.subr.mxu0 0.0
    %1100 = vmatpush1.msra.mxu0 0.0
    %1101 = vmatprep.subr.mxu0 0.0
    %1102 = vmatpush1.msra.mxu0 0.0
    %1103 = vmatprep.subr.mxu0 0.0
    %1104 = vmatpush1.msra.mxu0 0.0
    %1105 = vmatprep.subr.mxu0 0.0
    %1106 = vmatpush1.msra.mxu0 0.0
    %1107 = vmatprep.subr.mxu0 0.0
    %1108 = vmatpush1.msra.mxu0 0.0
    %1109 = vmatprep.subr.mxu0 0.0
    %1110 = vmatpush1.msra.mxu0 0.0
    %1111 = vmatprep.subr.mxu0 0.0
    %1112 = vmatpush1.msra.mxu0 0.0
    %1113 = vmatprep.subr.mxu0 0.0
    %1114 = vmatpush1.msra.mxu0 0.0
    %1115 = vmatprep.subr.mxu0 0.0
    %1116 = vmatpush1.msra.mxu0 0.0
    %1117 = vmatprep.subr.mxu0 0.0
    %1118 = vmatpush1.msra.mxu0 0.0
    %1119 = vmatprep.subr.mxu0 0.0
    %1120 = vmatpush1.msra.mxu0 0.0
    %1121 = vmatprep.subr.mxu0 0.0
    %1122 = vmatpush1.msra.mxu0 0.0
    %1123 = vmatprep.subr.mxu0 0.0
    %1124 = vmatpush1.msra.mxu0 0.0
    %1125 = vmatprep.subr.mxu0 0.0
    %1126 = vmatpush1.msra.mxu0 0.0
    %1127 = vmatprep.subr.mxu0 0.0
    %1128 = vmatpush1.msra.mxu0 0.0
    %1129 = vmatprep.subr.mxu0 0.0
    %1130 = vmatpush1.msra.mxu0 0.0
    %1131 = vmatprep.subr.mxu0 0.0
    %1132 = vmatpush1.msra.mxu0 0.0
    %1133 = vmatprep.subr.mxu0 0.0
    %1134 = vmatpush1.msra.mxu0 0.0
    %1135 = vmatprep.subr.mxu0 0.0
    %1136 = vmatpush1.msra.mxu0 0.0
    %1137 = vmatprep.subr.mxu0 0.0
    %1138 = vmatpush1.msra.mxu0 0.0
    %1139 = vmatprep.subr.mxu0 0.0
    %1140 = vmatpush1.msra.mxu0 0.0
    %1141 = vmatprep.subr.mxu0 0.0
    %1142 = vmatpush1.msra.mxu0 0.0
    %1143 = vmatprep.subr.mxu0 0.0
    %1144 = vmatpush1.msra.mxu0 0.0
    %1145 = vmatprep.subr.mxu0 0.0
    %1146 = vmatpush1.msra.mxu0 0.0
    %1147 = vmatprep.subr.mxu0 0.0
    %1148 = vmatpush1.msra.mxu0 0.0
    %1149 = vmatprep.subr.mxu0 0.0
    %1150 = vmatpush1.msra.mxu0 0.0
    %1151 = vmatprep.subr.mxu0 0.0
    %1152 = vmatpush1.msra.mxu0 0.0
    %1153 = vmatprep.subr.mxu0 0.0
    %1154 = vmatpush1.msra.mxu0 0.0
    %1155 = vmatprep.mubr.f32.mxu0 0.0
    %1156 = vmatmul.mubr.f32.gmra.mrb[0].mxu0 %v1089
    %v1157 = vpop.f32.mrb[0].mxu0
    %v1158 = vadd.f32 0.0, %v1157
    %v1159 = vpop.f32.mrb[0].mxu0
    %1160 = vdwg.mxu0
    %1161 = vrot.lane.b32.xlu0 %v150, 104
    %v1162 = vpop.permute.xlu0 %1161
    %1163 = vrot.lane.b32.xlu0 %v142, 72
    %v1164 = vpop.permute.xlu0 %1163
    %v1165 = vsel %vm155, %v1162, 0
    %v1167 = vsel %vm155, %v1164, 0
    %1169 = vmatprep.subr.mxu0 0.0
    %1170 = vmatpush1.xpose.msra.mxu0 %v1167
    %1171 = vmatprep.subr.mxu0 0.0
    %1172 = vmatpush1.xpose.msra.mxu0 0.0
    %1173 = vmatprep.subr.mxu0 0.0
    %1174 = vmatpush1.xpose.msra.mxu0 0.0
    %1175 = vmatprep.subr.mxu0 0.0
    %1176 = vmatpush1.xpose.msra.mxu0 0.0
    %1177 = vmatprep.subr.mxu0 0.0
    %1178 = vmatpush1.xpose.msra.mxu0 0.0
    %1179 = vmatprep.subr.mxu0 0.0
    %1180 = vmatpush1.xpose.msra.mxu0 0.0
    %1181 = vmatprep.subr.mxu0 0.0
    %1182 = vmatpush1.xpose.msra.mxu0 0.0
    %1183 = vmatprep.subr.mxu0 0.0
    %1184 = vmatpush1.xpose.msra.mxu0 0.0
    %1185 = vmatprep.subr.mxu0 0.0
    %1186 = vmatpush1.xpose.msra.mxu0 0.0
    %1187 = vmatprep.subr.mxu0 0.0
    %1188 = vmatpush1.xpose.msra.mxu0 0.0
    %1189 = vmatprep.subr.mxu0 0.0
    %1190 = vmatpush1.xpose.msra.mxu0 0.0
    %1191 = vmatprep.subr.mxu0 0.0
    %1192 = vmatpush1.xpose.msra.mxu0 0.0
    %1193 = vmatprep.subr.mxu0 0.0
    %1194 = vmatpush1.xpose.msra.mxu0 0.0
    %1195 = vmatprep.subr.mxu0 0.0
    %1196 = vmatpush1.xpose.msra.mxu0 0.0
    %1197 = vmatprep.subr.mxu0 0.0
    %1198 = vmatpush1.xpose.msra.mxu0 0.0
    %1199 = vmatprep.subr.mxu0 0.0
    %1200 = vmatpush1.xpose.msra.mxu0 0.0
    %1201 = vmatprep.subr.mxu0 0.0
    %1202 = vmatpush1.xpose.msra.mxu0 0.0
    %1203 = vmatprep.subr.mxu0 0.0
    %1204 = vmatpush1.xpose.msra.mxu0 0.0
    %1205 = vmatprep.subr.mxu0 0.0
    %1206 = vmatpush1.xpose.msra.mxu0 0.0
    %1207 = vmatprep.subr.mxu0 0.0
    %1208 = vmatpush1.xpose.msra.mxu0 0.0
    %1209 = vmatprep.subr.mxu0 0.0
    %1210 = vmatpush1.xpose.msra.mxu0 0.0
    %1211 = vmatprep.subr.mxu0 0.0
    %1212 = vmatpush1.xpose.msra.mxu0 0.0
    %1213 = vmatprep.subr.mxu0 0.0
    %1214 = vmatpush1.xpose.msra.mxu0 0.0
    %1215 = vmatprep.subr.mxu0 0.0
    %1216 = vmatpush1.xpose.msra.mxu0 0.0
    %1217 = vmatprep.subr.mxu0 0.0
    %1218 = vmatpush1.xpose.msra.mxu0 0.0
    %1219 = vmatprep.subr.mxu0 0.0
    %1220 = vmatpush1.xpose.msra.mxu0 0.0
    %1221 = vmatprep.subr.mxu0 0.0
    %1222 = vmatpush1.xpose.msra.mxu0 0.0
    %1223 = vmatprep.subr.mxu0 0.0
    %1224 = vmatpush1.xpose.msra.mxu0 0.0
    %1225 = vmatprep.subr.mxu0 0.0
    %1226 = vmatpush1.xpose.msra.mxu0 0.0
    %1227 = vmatprep.subr.mxu0 0.0
    %1228 = vmatpush1.xpose.msra.mxu0 0.0
    %1229 = vmatprep.subr.mxu0 0.0
    %1230 = vmatpush1.xpose.msra.mxu0 0.0
    %1231 = vmatprep.subr.mxu0 0.0
    %1232 = vmatpush1.xpose.msra.mxu0 0.0
    %1233 = vmatprep.mubr.f32.mxu0 0.0
    %1234 = vmatmul.mubr.f32.gmra.mrb[0].mxu0 %v1165
    %v1235 = vpop.f32.mrb[0].mxu0
    %v1236 = vadd.f32 0.0, %v1235
    %v1237 = vpop.f32.mrb[0].mxu0
    %1238 = vdwg.mxu0
    %1239 = vrot.lane.b32.xlu0 %v151, 104
    %v1240 = vpop.permute.xlu0 %1239
    %1241 = vrot.lane.b32.xlu0 %v147, 72
    %v1242 = vpop.permute.xlu0 %1241
    %v1243 = vsel %vm155, %v1240, 0
    %v1245 = vsel %vm155, %v1242, 0
    %1247 = vmatprep.subr.mxu0 0.0
    %1248 = vmatpush1.xpose.msra.mxu0 %v1245
    %1249 = vmatprep.subr.mxu0 0.0
    %1250 = vmatpush1.xpose.msra.mxu0 0.0
    %1251 = vmatprep.subr.mxu0 0.0
    %1252 = vmatpush1.xpose.msra.mxu0 0.0
    %1253 = vmatprep.subr.mxu0 0.0
    %1254 = vmatpush1.xpose.msra.mxu0 0.0
    %1255 = vmatprep.subr.mxu0 0.0
    %1256 = vmatpush1.xpose.msra.mxu0 0.0
    %1257 = vmatprep.subr.mxu0 0.0
    %1258 = vmatpush1.xpose.msra.mxu0 0.0
    %1259 = vmatprep.subr.mxu0 0.0
    %1260 = vmatpush1.xpose.msra.mxu0 0.0
    %1261 = vmatprep.subr.mxu0 0.0
    %1262 = vmatpush1.xpose.msra.mxu0 0.0
    %1263 = vmatprep.subr.mxu0 0.0
    %1264 = vmatpush1.xpose.msra.mxu0 0.0
    %1265 = vmatprep.subr.mxu0 0.0
    %1266 = vmatpush1.xpose.msra.mxu0 0.0
    %1267 = vmatprep.subr.mxu0 0.0
    %1268 = vmatpush1.xpose.msra.mxu0 0.0
    %1269 = vmatprep.subr.mxu0 0.0
    %1270 = vmatpush1.xpose.msra.mxu0 0.0
    %1271 = vmatprep.subr.mxu0 0.0
    %1272 = vmatpush1.xpose.msra.mxu0 0.0
    %1273 = vmatprep.subr.mxu0 0.0
    %1274 = vmatpush1.xpose.msra.mxu0 0.0
    %1275 = vmatprep.subr.mxu0 0.0
    %1276 = vmatpush1.xpose.msra.mxu0 0.0
    %1277 = vmatprep.subr.mxu0 0.0
    %1278 = vmatpush1.xpose.msra.mxu0 0.0
    %1279 = vmatprep.subr.mxu0 0.0
    %1280 = vmatpush1.xpose.msra.mxu0 0.0
    %1281 = vmatprep.subr.mxu0 0.0
    %1282 = vmatpush1.xpose.msra.mxu0 0.0
    %1283 = vmatprep.subr.mxu0 0.0
    %1284 = vmatpush1.xpose.msra.mxu0 0.0
    %1285 = vmatprep.subr.mxu0 0.0
    %1286 = vmatpush1.xpose.msra.mxu0 0.0
    %1287 = vmatprep.subr.mxu0 0.0
    %1288 = vmatpush1.xpose.msra.mxu0 0.0
    %1289 = vmatprep.subr.mxu0 0.0
    %1290 = vmatpush1.xpose.msra.mxu0 0.0
    %1291 = vmatprep.subr.mxu0 0.0
    %1292 = vmatpush1.xpose.msra.mxu0 0.0
    %1293 = vmatprep.subr.mxu0 0.0
    %1294 = vmatpush1.xpose.msra.mxu0 0.0
    %1295 = vmatprep.subr.mxu0 0.0
    %1296 = vmatpush1.xpose.msra.mxu0 0.0
    %1297 = vmatprep.subr.mxu0 0.0
    %1298 = vmatpush1.xpose.msra.mxu0 0.0
    %1299 = vmatprep.subr.mxu0 0.0
    %1300 = vmatpush1.xpose.msra.mxu0 0.0
    %1301 = vmatprep.subr.mxu0 0.0
    %1302 = vmatpush1.xpose.msra.mxu0 0.0
    %1303 = vmatprep.subr.mxu0 0.0
    %1304 = vmatpush1.xpose.msra.mxu0 0.0
    %1305 = vmatprep.subr.mxu0 0.0
    %1306 = vmatpush1.xpose.msra.mxu0 0.0
    %1307 = vmatprep.subr.mxu0 0.0
    %1308 = vmatpush1.xpose.msra.mxu0 0.0
    %1309 = vmatprep.subr.mxu0 0.0
    %1310 = vmatpush1.xpose.msra.mxu0 0.0
    %1311 = vmatprep.mubr.f32.mxu0 0.0
    %1312 = vmatmul.mubr.f32.gmra.mrb[0].mxu0 %v1243
    %v1313 = vpop.f32.mrb[0].mxu0
    %v1314 = vadd.f32 0.0, %v1313
    %v1315 = vpop.f32.mrb[0].mxu0
    %1316 = vdwg.mxu0
    %v1317 = vsel %vm155, %v1236, -inf
    %1318 = vmax.xlane.f32.xlu0 %v1317
    %v1319 = vpop.xlane.xlu0 %1318
    %v1320 = vsel %vm155, %v1314, -inf
    %1321 = vmax.xlane.f32.xlu0 %v1320
    %v1322 = vpop.xlane.xlu0 %1321
    %v1323 = vsub.f32 %v1236, %v1319
    %v1324 = vsub.f32 %v1314, %v1322
    %v1325 = vmul.f32 %v1323, 1.442695
    %v1326 = vpow.pop %v1325
    %v1327 = vmul.f32 %v1324, 1.442695
    %v1328 = vpow.pop %v1327
    %v1329 = vsel %vm155, %v1326, 0.0
    %1330 = vadd.xlane.f32.xlu0 %v1329
    %v1331 = vpop.xlane.xlu0 %1330
    %v1332 = vsel %vm155, %v1328, 0.0
    %1333 = vadd.xlane.f32.xlu0 %v1332
    %v1334 = vpop.xlane.xlu0 %1333
    %v1335 = vrcp.pop %v1331
    %v1336 = vrcp.pop %v1334
    %v1337 = vmul.f32 %v1331, %v1335
    %v1338 = vmul.f32 %v1334, %v1336
    %v1339 = vsub.f32 2.0, %v1337
    %v1340 = vsub.f32 2.0, %v1338
    %v1341 = vmul.f32 %v1335, %v1339
    %v1342 = vmul.f32 %v1336, %v1340
    %v1343 = vmul.f32 %v1326, %v1341
    %v1344 = vmul.f32 %v1328, %v1342
    %1345 = vrot.lane.b32.xlu0 %v142, 40
    %v1346 = vpop.permute.xlu0 %1345
    %v1349 = vsel %vm155, %v1343, 0
    %1351 = vmatprep.subr.mxu0 0.0
    %1352 = vmatpush1.msra.mxu0 %v1346
    %1353 = vmatprep.subr.mxu0 0.0
    %1354 = vmatpush1.msra.mxu0 0.0
    %1355 = vmatprep.subr.mxu0 0.0
    %1356 = vmatpush1.msra.mxu0 0.0
    %1357 = vmatprep.subr.mxu0 0.0
    %1358 = vmatpush1.msra.mxu0 0.0
    %1359 = vmatprep.subr.mxu0 0.0
    %1360 = vmatpush1.msra.mxu0 0.0
    %1361 = vmatprep.subr.mxu0 0.0
    %1362 = vmatpush1.msra.mxu0 0.0
    %1363 = vmatprep.subr.mxu0 0.0
    %1364 = vmatpush1.msra.mxu0 0.0
    %1365 = vmatprep.subr.mxu0 0.0
    %1366 = vmatpush1.msra.mxu0 0.0
    %1367 = vmatprep.subr.mxu0 0.0
    %1368 = vmatpush1.msra.mxu0 0.0
    %1369 = vmatprep.subr.mxu0 0.0
    %1370 = vmatpush1.msra.mxu0 0.0
    %1371 = vmatprep.subr.mxu0 0.0
    %1372 = vmatpush1.msra.mxu0 0.0
    %1373 = vmatprep.subr.mxu0 0.0
    %1374 = vmatpush1.msra.mxu0 0.0
    %1375 = vmatprep.subr.mxu0 0.0
    %1376 = vmatpush1.msra.mxu0 0.0
    %1377 = vmatprep.subr.mxu0 0.0
    %1378 = vmatpush1.msra.mxu0 0.0
    %1379 = vmatprep.subr.mxu0 0.0
    %1380 = vmatpush1.msra.mxu0 0.0
    %1381 = vmatprep.subr.mxu0 0.0
    %1382 = vmatpush1.msra.mxu0 0.0
    %1383 = vmatprep.subr.mxu0 0.0
    %1384 = vmatpush1.msra.mxu0 0.0
    %1385 = vmatprep.subr.mxu0 0.0
    %1386 = vmatpush1.msra.mxu0 0.0
    %1387 = vmatprep.subr.mxu0 0.0
    %1388 = vmatpush1.msra.mxu0 0.0
    %1389 = vmatprep.subr.mxu0 0.0
    %1390 = vmatpush1.msra.mxu0 0.0
    %1391 = vmatprep.subr.mxu0 0.0
    %1392 = vmatpush1.msra.mxu0 0.0
    %1393 = vmatprep.subr.mxu0 0.0
    %1394 = vmatpush1.msra.mxu0 0.0
    %1395 = vmatprep.subr.mxu0 0.0
    %1396 = vmatpush1.msra.mxu0 0.0
    %1397 = vmatprep.subr.mxu0 0.0
    %1398 = vmatpush1.msra.mxu0 0.0
    %1399 = vmatprep.subr.mxu0 0.0
    %1400 = vmatpush1.msra.mxu0 0.0
    %1401 = vmatprep.subr.mxu0 0.0
    %1402 = vmatpush1.msra.mxu0 0.0
    %1403 = vmatprep.subr.mxu0 0.0
    %1404 = vmatpush1.msra.mxu0 0.0
    %1405 = vmatprep.subr.mxu0 0.0
    %1406 = vmatpush1.msra.mxu0 0.0
    %1407 = vmatprep.subr.mxu0 0.0
    %1408 = vmatpush1.msra.mxu0 0.0
    %1409 = vmatprep.subr.mxu0 0.0
    %1410 = vmatpush1.msra.mxu0 0.0
    %1411 = vmatprep.subr.mxu0 0.0
    %1412 = vmatpush1.msra.mxu0 0.0
    %1413 = vmatprep.subr.mxu0 0.0
    %1414 = vmatpush1.msra.mxu0 0.0
    %1415 = vmatprep.mubr.f32.mxu0 0.0
    %1416 = vmatmul.mubr.f32.gmra.mrb[0].mxu0 %v1349
    %v1417 = vpop.f32.mrb[0].mxu0
    %v1418 = vadd.f32 0.0, %v1417
    %v1419 = vpop.f32.mrb[0].mxu0
    %1420 = vdwg.mxu0
    %1421 = vrot.lane.b32.xlu0 %v147, 40
    %v1422 = vpop.permute.xlu0 %1421
    %v1425 = vsel %vm155, %v1344, 0
    %1427 = vmatprep.subr.mxu0 0.0
    %1428 = vmatpush1.msra.mxu0 %v1422
    %1429 = vmatprep.subr.mxu0 0.0
    %1430 = vmatpush1.msra.mxu0 0.0
    %1431 = vmatprep.subr.mxu0 0.0
    %1432 = vmatpush1.msra.mxu0 0.0
    %1433 = vmatprep.subr.mxu0 0.0
    %1434 = vmatpush1.msra.mxu0 0.0
    %1435 = vmatprep.subr.mxu0 0.0
    %1436 = vmatpush1.msra.mxu0 0.0
    %1437 = vmatprep.subr.mxu0 0.0
    %1438 = vmatpush1.msra.mxu0 0.0
    %1439 = vmatprep.subr.mxu0 0.0
    %1440 = vmatpush1.msra.mxu0 0.0
    %1441 = vmatprep.subr.mxu0 0.0
    %1442 = vmatpush1.msra.mxu0 0.0
    %1443 = vmatprep.subr.mxu0 0.0
    %1444 = vmatpush1.msra.mxu0 0.0
    %1445 = vmatprep.subr.mxu0 0.0
    %1446 = vmatpush1.msra.mxu0 0.0
    %1447 = vmatprep.subr.mxu0 0.0
    %1448 = vmatpush1.msra.mxu0 0.0
    %1449 = vmatprep.subr.mxu0 0.0
    %1450 = vmatpush1.msra.mxu0 0.0
    %1451 = vmatprep.subr.mxu0 0.0
    %1452 = vmatpush1.msra.mxu0 0.0
    %1453 = vmatprep.subr.mxu0 0.0
    %1454 = vmatpush1.msra.mxu0 0.0
    %1455 = vmatprep.subr.mxu0 0.0
    %1456 = vmatpush1.msra.mxu0 0.0
    %1457 = vmatprep.subr.mxu0 0.0
    %1458 = vmatpush1.msra.mxu0 0.0
    %1459 = vmatprep.subr.mxu0 0.0
    %1460 = vmatpush1.msra.mxu0 0.0
    %1461 = vmatprep.subr.mxu0 0.0
    %1462 = vmatpush1.msra.mxu0 0.0
    %1463 = vmatprep.subr.mxu0 0.0
    %1464 = vmatpush1.msra.mxu0 0.0
    %1465 = vmatprep.subr.mxu0 0.0
    %1466 = vmatpush1.msra.mxu0 0.0
    %1467 = vmatprep.subr.mxu0 0.0
    %1468 = vmatpush1.msra.mxu0 0.0
    %1469 = vmatprep.subr.mxu0 0.0
    %1470 = vmatpush1.msra.mxu0 0.0
    %1471 = vmatprep.subr.mxu0 0.0
    %1472 = vmatpush1.msra.mxu0 0.0
    %1473 = vmatprep.subr.mxu0 0.0
    %1474 = vmatpush1.msra.mxu0 0.0
    %1475 = vmatprep.subr.mxu0 0.0
    %1476 = vmatpush1.msra.mxu0 0.0
    %1477 = vmatprep.subr.mxu0 0.0
    %1478 = vmatpush1.msra.mxu0 0.0
    %1479 = vmatprep.subr.mxu0 0.0
    %1480 = vmatpush1.msra.mxu0 0.0
    %1481 = vmatprep.subr.mxu0 0.0
    %1482 = vmatpush1.msra.mxu0 0.0
    %1483 = vmatprep.subr.mxu0 0.0
    %1484 = vmatpush1.msra.mxu0 0.0
    %1485 = vmatprep.subr.mxu0 0.0
    %1486 = vmatpush1.msra.mxu0 0.0
    %1487 = vmatprep.subr.mxu0 0.0
    %1488 = vmatpush1.msra.mxu0 0.0
    %1489 = vmatprep.subr.mxu0 0.0
    %1490 = vmatpush1.msra.mxu0 0.0
    %1491 = vmatprep.mubr.f32.mxu0 0.0
    %1492 = vmatmul.mubr.f32.gmra.mrb[0].mxu0 %v1425
    %v1493 = vpop.f32.mrb[0].mxu0
    %v1494 = vadd.f32 0.0, %v1493
    %v1495 = vpop.f32.mrb[0].mxu0
    %1496 = vdwg.mxu0
    %1499 = vrot.lane.b32.xlu0 %v746, 8
    %v1500 = vpop.permute.xlu0 %1499
    %1501 = vrot.lane.b32.xlu0 %v822, 8
    %v1502 = vpop.permute.xlu0 %1501
    %1507 = vrot.lane.b32.xlu0 %v1082, 16
    %v1508 = vpop.permute.xlu0 %1507
    %1509 = vrot.lane.b32.xlu0 %v1158, 16
    %v1510 = vpop.permute.xlu0 %1509
    %1515 = vrot.lane.b32.xlu0 %v1418, 24
    %v1516 = vpop.permute.xlu0 %1515
    %1517 = vrot.lane.b32.xlu0 %v1494, 24
    %v1518 = vpop.permute.xlu0 %1517
    %v1521 = vsel %vm155, %v410, %v1500
    %v1522 = vsel %vm155, %v486, %v1502
    %vm1523 = vcmask 130048
    %v1524 = vsel %vm1523, %v1521, %v1508
    %v1525 = vsel %vm1523, %v1522, %v1510
    %vm1526 = vcmask 195584
    %v1527 = vsel %vm1526, %v1524, %v1516
    %v1528 = vsel %vm1526, %v1525, %v1518
    %v1530 = vsel %vm68, %v1527, 0
    %v1533 = vsel %vm68, %v1528, 0
    %1535 = vmatprep.subr.mxu0 0.0
    %1536 = vmatpush1.msra.mxu0 %v46
    %1537 = vmatprep.subr.mxu0 0.0
    %1538 = vmatpush1.msra.mxu0 %v47
    %1539 = vmatprep.subr.mxu0 0.0
    %1540 = vmatpush1.msra.mxu0 %v48
    %1541 = vmatprep.subr.mxu0 0.0
    %1542 = vmatpush1.msra.mxu0 %v49
    %1543 = vmatprep.subr.mxu0 0.0
    %1544 = vmatpush1.msra.mxu0 0.0
    %1545 = vmatprep.subr.mxu0 0.0
    %1546 = vmatpush1.msra.mxu0 0.0
    %1547 = vmatprep.subr.mxu0 0.0
    %1548 = vmatpush1.msra.mxu0 0.0
    %1549 = vmatprep.subr.mxu0 0.0
    %1550 = vmatpush1.msra.mxu0 0.0
    %1551 = vmatprep.subr.mxu0 0.0
    %1552 = vmatpush1.msra.mxu0 0.0
    %1553 = vmatprep.subr.mxu0 0.0
    %1554 = vmatpush1.msra.mxu0 0.0
    %1555 = vmatprep.subr.mxu0 0.0
    %1556 = vmatpush1.msra.mxu0 0.0
    %1557 = vmatprep.subr.mxu0 0.0
    %1558 = vmatpush1.msra.mxu0 0.0
    %1559 = vmatprep.subr.mxu0 0.0
    %1560 = vmatpush1.msra.mxu0 0.0
    %1561 = vmatprep.subr.mxu0 0.0
    %1562 = vmatpush1.msra.mxu0 0.0
    %1563 = vmatprep.subr.mxu0 0.0
    %1564 = vmatpush1.msra.mxu0 0.0
    %1565 = vmatprep.subr.mxu0 0.0
    %1566 = vmatpush1.msra.mxu0 0.0
    %1567 = vmatprep.subr.mxu0 0.0
    %1568 = vmatpush1.msra.mxu0 0.0
    %1569 = vmatprep.subr.mxu0 0.0
    %1570 = vmatpush1.msra.mxu0 0.0
    %1571 = vmatprep.subr.mxu0 0.0
    %1572 = vmatpush1.msra.mxu0 0.0
    %1573 = vmatprep.subr.mxu0 0.0
    %1574 = vmatpush1.msra.mxu0 0.0
    %1575 = vmatprep.subr.mxu0 0.0
    %1576 = vmatpush1.msra.mxu0 0.0
    %1577 = vmatprep.subr.mxu0 0.0
    %1578 = vmatpush1.msra.mxu0 0.0
    %1579 = vmatprep.subr.mxu0 0.0
    %1580 = vmatpush1.msra.mxu0 0.0
    %1581 = vmatprep.subr.mxu0 0.0
    %1582 = vmatpush1.msra.mxu0 0.0
    %1583 = vmatprep.subr.mxu0 0.0
    %1584 = vmatpush1.msra.mxu0 0.0
    %1585 = vmatprep.subr.mxu0 0.0
    %1586 = vmatpush1.msra.mxu0 0.0
    %1587 = vmatprep.subr.mxu0 0.0
    %1588 = vmatpush1.msra.mxu0 0.0
    %1589 = vmatprep.subr.mxu0 0.0
    %1590 = vmatpush1.msra.mxu0 0.0
    %1591 = vmatprep.subr.mxu0 0.0
    %1592 = vmatpush1.msra.mxu0 0.0
    %1593 = vmatprep.subr.mxu0 0.0
    %1594 = vmatpush1.msra.mxu0 0.0
    %1595 = vmatprep.subr.mxu0 0.0
    %1596 = vmatpush1.msra.mxu0 0.0
    %1597 = vmatprep.subr.mxu0 0.0
    %1598 = vmatpush1.msra.mxu0 0.0
    %1599 = vmatprep.mubr.f32.mxu0 0.0
    %1600 = vmatmul.mubr.f32.gmra.mrb[0].mxu0 %v1530
    %v1601 = vpop.f32.mrb[0].mxu0
    %v1602 = vadd.f32 %v56, %v1601
    %v1603 = vpop.f32.mrb[0].mxu0
    %1604 = vmatprep.mubr.f32.mxu0 0.0
    %1605 = vmatmul.mubr.f32.gmra.mrb[0].mxu0 %v1533
    %v1606 = vpop.f32.mrb[0].mxu0
    %v1607 = vadd.f32 %v57, %v1606
    %v1608 = vpop.f32.mrb[0].mxu0
    %1609 = vdwg.mxu0
    %v1611 = vsel %vm68, %v1602, 0
    %v1614 = vsel %vm68, %v1607, 0
    %1616 = vmatprep.subr.mxu0 0.0
    %1617 = vmatpush1.msra.mxu0 %v50
    %1618 = vmatprep.subr.mxu0 0.0
    %1619 = vmatpush1.msra.mxu0 %v51
    %1620 = vmatprep.subr.mxu0 0.0
    %1621 = vmatpush1.msra.mxu0 %v52
    %1622 = vmatprep.subr.mxu0 0.0
    %1623 = vmatpush1.msra.mxu0 %v53
    %1624 = vmatprep.subr.mxu0 0.0
    %1625 = vmatpush1.msra.mxu0 0.0
    %1626 = vmatprep.subr.mxu0 0.0
    %1627 = vmatpush1.msra.mxu0 0.0
    %1628 = vmatprep.subr.mxu0 0.0
    %1629 = vmatpush1.msra.mxu0 0.0
    %1630 = vmatprep.subr.mxu0 0.0
    %1631 = vmatpush1.msra.mxu0 0.0
    %1632 = vmatprep.subr.mxu0 0.0
    %1633 = vmatpush1.msra.mxu0 0.0
    %1634 = vmatprep.subr.mxu0 0.0
    %1635 = vmatpush1.msra.mxu0 0.0
    %1636 = vmatprep.subr.mxu0 0.0
    %1637 = vmatpush1.msra.mxu0 0.0
    %1638 = vmatprep.subr.mxu0 0.0
    %1639 = vmatpush1.msra.mxu0 0.0
    %1640 = vmatprep.subr.mxu0 0.0
    %1641 = vmatpush1.msra.mxu0 0.0
    %1642 = vmatprep.subr.mxu0 0.0
    %1643 = vmatpush1.msra.mxu0 0.0
    %1644 = vmatprep.subr.mxu0 0.0
    %1645 = vmatpush1.msra.mxu0 0.0
    %1646 = vmatprep.subr.mxu0 0.0
    %1647 = vmatpush1.msra.mxu0 0.0
    %1648 = vmatprep.subr.mxu0 0.0
    %1649 = vmatpush1.msra.mxu0 0.0
    %1650 = vmatprep.subr.mxu0 0.0
    %1651 = vmatpush1.msra.mxu0 0.0
    %1652 = vmatprep.subr.mxu0 0.0
    %1653 = vmatpush1.msra.mxu0 0.0
    %1654 = vmatprep.subr.mxu0 0.0
    %1655 = vmatpush1.msra.mxu0 0.0
    %1656 = vmatprep.subr.mxu0 0.0
    %1657 = vmatpush1.msra.mxu0 0.0
    %1658 = vmatprep.subr.mxu0 0.0
    %1659 = vmatpush1.msra.mxu0 0.0
    %1660 = vmatprep.subr.mxu0 0.0
    %1661 = vmatpush1.msra.mxu0 0.0
    %1662 = vmatprep.subr.mxu0 0.0
    %1663 = vmatpush1.msra.mxu0 0.0
    %1664 = vmatprep.subr.mxu0 0.0
    %1665 = vmatpush1.msra.mxu0 0.0
    %1666 = vmatprep.subr.mxu0 0.0
    %1667 = vmatpush1.msra.mxu0 0.0
    %1668 = vmatprep.subr.mxu0 0.0
    %1669 = vmatpush1.msra.mxu0 0.0
    %1670 = vmatprep.subr.mxu0 0.0
    %1671 = vmatpush1.msra.mxu0 0.0
    %1672 = vmatprep.subr.mxu0 0.0
    %1673 = vmatpush1.msra.mxu0 0.0
    %1674 = vmatprep.subr.mxu0 0.0
    %1675 = vmatpush1.msra.mxu0 0.0
    %1676 = vmatprep.subr.mxu0 0.0
    %1677 = vmatpush1.msra.mxu0 0.0
    %1678 = vmatprep.subr.mxu0 0.0
    %1679 = vmatpush1.msra.mxu0 0.0
    %1680 = vmatprep.mubr.f32.mxu0 0.0
    %1681 = vmatmul.mubr.f32.gmra.mrb[0].mxu0 %v1611
    %v1682 = vpop.f32.mrb[0].mxu0
    %v1683 = vadd.f32 %v58, %v1682
    %v1684 = vpop.f32.mrb[0].mxu0
    %1685 = vmatprep.mubr.f32.mxu0 0.0
    %1686 = vmatmul.mubr.f32.gmra.mrb[0].mxu0 %v1614
    %v1687 = vpop.f32.mrb[0].mxu0
    %v1688 = vadd.f32 %v59, %v1687
    %v1689 = vpop.f32.mrb[0].mxu0
    %1690 = vdwg.mxu0
    %v1691 = vsel %vm1523, %v1683, 0.0
    %1692 = vadd.xlane.f32.xlu0 %v1691
    %v1693 = vpop.xlane.xlu0 %1692
    %v1694 = vsel %vm1523, %v1688, 0.0
    %1695 = vadd.xlane.f32.xlu0 %v1694
    %v1696 = vpop.xlane.xlu0 %1695
    %v1697 = vrcp.pop 16.0
    %v1698 = vmul.f32 %v1693, %v1697
    %v1699 = vmul.f32 %v1696, %v1697
    %v1700 = vsub.f32 %v1683, %v1698
    %v1701 = vsub.f32 %v1688, %v1699
    %v1702 = vmul.f32 %v1700, %v1700
    %v1703 = vmul.f32 %v1701, %v1701
    %v1704 = vsel %vm1523, %v1702, 0.0
    %1705 = vadd.xlane.f32.xlu0 %v1704
    %v1706 = vpop.xlane.xlu0 %1705
    %v1707 = vsel %vm1523, %v1703, 0.0
    %1708 = vadd.xlane.f32.xlu0 %v1707
    %v1709 = vpop.xlane.xlu0 %1708
    %v1710 = vmul.f32 %v1706, %v1697
    %v1711 = vmul.f32 %v1709, %v1697
    %v1712 = vadd.f32 %v1710, 1e-05
    %v1713 = vadd.f32 %v1711, 1e-05
    %v1714 = vrsqrt.pop %v1712
    %v1715 = vrsqrt.pop %v1713
    %v1716 = vmul.f32 %v1700, %v1714
    %v1717 = vmul.f32 %v1701, %v1715
    %v1718 = vmul.f32 %v1716, %v60
    %v1719 = vmul.f32 %v1717, %v61
    %v1720 = vadd.f32 %v1718, %v62
    %v1721 = vadd.f32 %v1719, %v63
    %v1722 = vmax.f32 %v1720, 0.0
    %v1723 = vmax.f32 %v1721, 0.0
    %v1724 = vmul.f32 %v1722, %v64
    %v1725 = vmul.f32 %v1723, %v65
    %v1726 = vsel %vm1523, %v1724, 0.0
    %1727 = vadd.xlane.f32.xlu0 %v1726
    %v1728 = vpop.xlane.xlu0 %1727
    %v1729 = vsel %vm1523, %v1725, 0.0
    %1730 = vadd.xlane.f32.xlu0 %v1729
    %v1731 = vpop.xlane.xlu0 %1730
    %v1732 = vadd.f32 %v1728, %v66
    %v1733 = vadd.f32 %v1731, %v67
    %v1734 = vxor.u32 %v1732, 2147483648
    %v1735 = vxor.u32 %v1733, 2147483648
    %v1736 = vmul.f32 %v1734, 1.442695
    %v1737 = vpow.pop %v1736
    %v1738 = vmul.f32 %v1735, 1.442695
    %v1739 = vpow.pop %v1738
    %v1740 = vadd.f32 %v1737, 1.0
    %v1741 = vadd.f32 %v1739, 1.0
    %v1742 = vrcp.pop %v1740
    %v1743 = vmul.f32 1.0, %v1742
    %v1744 = vrcp.pop %v1741
    %v1745 = vmul.f32 1.0, %v1744
    %1746 = vst.msk [vmem:[#allocation7] sm:$0xff] %vm68, %v1602
    %1747 = vst.msk [vmem:[#allocation7 + $0x8] sm:$0xff] %vm68, %v1607
    %1750 = vrot.lane.b32.xlu0 %v1743, 32
    %v1751 = vpop.permute.xlu0 %1750
    %1752 = vrot.lane.b32.xlu0 %v1745, 32
    %v1753 = vpop.permute.xlu0 %1752
    %vm1756 = vcmask 269568
    %1757 = vst.msk [vmem:[#allocation7] sm:$0xff] %vm1756, %v1751
    %1758 = vst.msk [vmem:[#allocation7 + $0x8] sm:$0xff] %vm1756, %v1753
    // Predicated region
    $region18: #{tpu_custom_call.1} parent=1 // pred_check
      _
    $region19: #{tpu_custom_call.1} parent=1 // pred_check_branch
      %1760 = sbr.rel (0) target = $region21
    $region20: #{tpu_custom_call.1} parent=1 // pred_region
      %s1762 = ssub.s32 256, 256
      %1763 = vsyncadd [#allocation4], %s1762
      %s1764 = sshll.u32 [#allocation7], 4
      %s1765 = int_to_ptr.vmem [resolvable:$true] %s1764
      %1770 = dma.vmem_to_hbm [thread:$0]  %s1765, 256, %s2, [#allocation4], 128, 128, 8
    $region21: #{tpu_custom_call.1} parent=1 // pred_fallthru
      _
    // Predicated region
    $region22: #{tpu_custom_call.1} parent=1 // pred_check
      _
    $region23: #{tpu_custom_call.1} parent=1 // pred_check_branch
      %1772 = sbr.rel (0) target = $region25
    $region24: #{tpu_custom_call.1} parent=1 // pred_region
      %1773 = dma.done [#allocation4], 256
    $region25: #{tpu_custom_call.1} parent=1 // pred_fallthru
      _
    %1774 = vsyncpa [#allocation3], 1
    %1775 = vsyncpa [#allocation6], 1
    %1776 = vsyncpa [#allocation4], 1

</llo_original>
